<compile_context>
chip_gen: v7x
topology: tpu7x:2x2x1
jax: 0.10.0
libtpu: 0.0.40
codegen_flags: <defaults>
</compile_context>

<pallas_src>
import functools

import jax
import jax.numpy as jnp
from jax.experimental import pallas as pl
from jax.experimental.pallas import tpu as pltpu


# ----------------------------------------------------------------------------
# Fused kernel: the entire 1x1-conv stack on a (C, M) feature slab, M = B*H*W.
# ----------------------------------------------------------------------------
def _pixel_disc_kernel(feat_ref, w1_ref, b1_ref, w2_ref, gamma_ref, beta_ref,
                       w3_ref, out_ref, *, eps, use_sigmoid):
    feat = feat_ref[...]                                           # (Cin+nz, M)

    # --- conv1 (1x1, bias) + LeakyReLU(0.2) -------------------------------
    h1 = jnp.dot(w1_ref[...], feat,
                 preferred_element_type=jnp.float32) + b1_ref[...]  # (ndf, M)
    h1 = jnp.where(h1 > 0.0, h1, 0.2 * h1)

    # --- conv2 (1x1, no bias) ---------------------------------------------
    h2 = jnp.dot(w2_ref[...], h1,
                 preferred_element_type=jnp.float32)                # (2ndf, M)

    # --- BatchNorm2d(2ndf), training-mode batch statistics ------------------
    # Per-channel stats over all N*H*W pixels (lane-axis reduce on the XLU).
    mean = jnp.mean(h2, axis=1, keepdims=True)                      # (2ndf, 1)
    var = jnp.mean((h2 - mean) ** 2, axis=1, keepdims=True)         # biased var
    h2 = (h2 - mean) * jax.lax.rsqrt(var + eps)
    h2 = h2 * gamma_ref[...] + beta_ref[...]

    # --- LeakyReLU(0.2) -----------------------------------------------------
    h2 = jnp.where(h2 > 0.0, h2, 0.2 * h2)

    # --- conv3 (1x1, no bias) -> (1, M), lane-dense output ------------------
    out = jnp.dot(w3_ref[...], h2, preferred_element_type=jnp.float32)
    if use_sigmoid:
        out = jax.nn.sigmoid(out)
    out_ref[...] = out.astype(out_ref.dtype)


# ----------------------------------------------------------------------------
# Wrapper: channel-concat of z (glue), layout to (C, B*H*W), one pallas_call.
# ----------------------------------------------------------------------------
def pixel_discriminator(params, x, z=None, *, use_sigmoid=False, eps=1e-5):
    b, cin, h, w = x.shape
    m = b * h * w

    # (B, Cin, H, W) -> (Cin, B*H*W); column index = b*H*W + h*W + w.
    xt = x.astype(jnp.float32).transpose(1, 0, 2, 3).reshape(cin, m)
    if z is not None:
        nz = z.shape[1]
        zt = jnp.broadcast_to(z.astype(jnp.float32).T[:, :, None],
                              (nz, b, h * w)).reshape(nz, m)
        feat = jnp.concatenate([xt, zt], axis=0)                    # (Cin+nz, M)
    else:
        feat = xt

    ndf = params["w1"].shape[0]
    ndf2 = params["w2"].shape[0]
    assert feat.shape[0] == params["w1"].shape[1], "channel mismatch with w1"

    vmem = pl.BlockSpec(memory_space=pltpu.MemorySpace.VMEM)
    out = pl.pallas_call(
        functools.partial(_pixel_disc_kernel, eps=eps, use_sigmoid=use_sigmoid),
        out_shape=jax.ShapeDtypeStruct((1, m), jnp.float32),
        in_specs=[vmem] * 7,
        out_specs=vmem,
    )(
        feat,
        params["w1"].astype(jnp.float32),                 # (ndf, Cin+nz)
        params["b1"].reshape(ndf, 1).astype(jnp.float32),
        params["w2"].astype(jnp.float32),                 # (2ndf, ndf)
        params["gamma"].reshape(ndf2, 1).astype(jnp.float32),
        params["beta"].reshape(ndf2, 1).astype(jnp.float32),
        params["w3"].astype(jnp.float32),                 # (1, 2ndf)
    )
    # (1, B*H*W) -> (B, 1, H, W)
    return out.reshape(b, h, w)[:, None, :, :]


# ----------------------------------------------------------------------------
# Deterministic PyTorch-like parameter init.
# TODO(synk): BatchNorm running_mean/running_var buffers (and their momentum
#             update) are stateful training bookkeeping, not part of the
#             training-mode forward math, so they are not reproduced here.
# ----------------------------------------------------------------------------
def init_params(key, input_nc, nz, ndf=64):
    ks = jax.random.split(key, 4)

    def u(k, shape, fan_in):
        bound = fan_in ** -0.5
        return jax.random.uniform(k, shape, jnp.float32, -bound, bound)

    cin = input_nc + nz
    return {
        "w1": u(ks[0], (ndf, cin), cin),          # Conv2d(cin, ndf, 1) weight
        "b1": u(ks[1], (ndf,), cin),              # Conv2d(cin, ndf, 1) bias
        "w2": u(ks[2], (2 * ndf, ndf), ndf),      # Conv2d(ndf, 2ndf, 1), no bias
        "gamma": jnp.ones((2 * ndf,), jnp.float32),
        "beta": jnp.zeros((2 * ndf,), jnp.float32),
        "w3": u(ks[3], (1, 2 * ndf), 2 * ndf),    # Conv2d(2ndf, 1, 1), no bias
    }


if __name__ == "__main__":
    key = jax.random.PRNGKey(0)
    kx, kz, kp = jax.random.split(key, 3)

    input_nc, nz, ndf = 4, 8, 64
    x = jax.random.normal(kx, (2, input_nc, 16, 16), dtype=jnp.float32)
    z = jax.random.normal(kz, (2, nz), dtype=jnp.float32)
    params = init_params(kp, input_nc=input_nc, nz=nz, ndf=ndf)

    fwd = jax.jit(pixel_discriminator)
    out = fwd(params, x, z)
    jax.block_until_ready(out)

    assert out.shape == (2, 1, 16, 16), out.shape
    assert bool(jnp.all(jnp.isfinite(out)))
    print("KERNEL_OK")
</pallas_src>

<mosaic_0001>
module attributes {stable_mosaic.version = 11 : i64} {
  func.func @_pixel_disc_kernel(%arg0: memref<12x512xf32, #tpu.memory_space<vmem>>, %arg1: memref<64x12xf32, #tpu.memory_space<vmem>>, %arg2: memref<64x1xf32, #tpu.memory_space<vmem>>, %arg3: memref<128x64xf32, #tpu.memory_space<vmem>>, %arg4: memref<128x1xf32, #tpu.memory_space<vmem>>, %arg5: memref<128x1xf32, #tpu.memory_space<vmem>>, %arg6: memref<1x128xf32, #tpu.memory_space<vmem>>, %arg7: memref<1x512xf32, #tpu.memory_space<vmem>>) attributes {dimension_semantics = [], scalar_prefetch = 0 : i64, scratch_operands = 0 : i64, tpu.core_type = #tpu.core_type<tc>} {
    %c0 = arith.constant 0 : index
    %c0_0 = arith.constant 0 : index
    %0 = vector.load %arg0[%c0, %c0_0] : memref<12x512xf32, #tpu.memory_space<vmem>>, vector<12x512xf32>
    %c0_1 = arith.constant 0 : index
    %c0_2 = arith.constant 0 : index
    %1 = vector.load %arg1[%c0_1, %c0_2] : memref<64x12xf32, #tpu.memory_space<vmem>>, vector<64x12xf32>
    %cst = arith.constant dense<0.000000e+00> : vector<64x512xf32>
    %2 = tpu.matmul %1, %0, %cst {dimension_numbers = #tpu.dot_dimension_numbers<[1], [0], [0], [1], [0, 0, 1, 1], [], []>} : vector<64x12xf32>, vector<12x512xf32>, vector<64x512xf32> -> vector<64x512xf32>
    %c0_3 = arith.constant 0 : index
    %c0_4 = arith.constant 0 : index
    %3 = vector.load %arg2[%c0_3, %c0_4] : memref<64x1xf32, #tpu.memory_space<vmem>>, vector<64x1xf32>
    %4 = vector.broadcast %3 : vector<64x1xf32> to vector<64x512xf32>
    %5 = arith.addf %2, %4 : vector<64x512xf32>
    %cst_5 = arith.constant 0.000000e+00 : f32
    %6 = vector.broadcast %cst_5 : f32 to vector<64x512xf32>
    %7 = arith.cmpf ogt, %5, %6 : vector<64x512xf32>
    %cst_6 = arith.constant 2.000000e-01 : f32
    %8 = vector.broadcast %cst_6 : f32 to vector<64x512xf32>
    %9 = arith.mulf %8, %5 : vector<64x512xf32>
    %10 = arith.select %7, %5, %9 : vector<64x512xi1>, vector<64x512xf32>
    %c0_7 = arith.constant 0 : index
    %c0_8 = arith.constant 0 : index
    %11 = vector.load %arg3[%c0_7, %c0_8] : memref<128x64xf32, #tpu.memory_space<vmem>>, vector<128x64xf32>
    %cst_9 = arith.constant dense<0.000000e+00> : vector<128x512xf32>
    %12 = tpu.matmul %11, %10, %cst_9 {dimension_numbers = #tpu.dot_dimension_numbers<[1], [0], [0], [1], [0, 0, 1, 1], [], []>} : vector<128x64xf32>, vector<64x512xf32>, vector<128x512xf32> -> vector<128x512xf32>
    %cst_10 = arith.constant dense<0.000000e+00> : vector<128xf32>
    %13 = vector.multi_reduction <add>, %12, %cst_10 [1] : vector<128x512xf32> to vector<128xf32>
    %14 = vector.shape_cast %13 : vector<128xf32> to vector<128x1xf32>
    %cst_11 = arith.constant 5.120000e+02 : f32
    %15 = vector.broadcast %cst_11 : f32 to vector<128x1xf32>
    %16 = arith.divf %14, %15 : vector<128x1xf32>
    %17 = vector.broadcast %16 : vector<128x1xf32> to vector<128x512xf32>
    %18 = arith.subf %12, %17 : vector<128x512xf32>
    %19 = arith.mulf %18, %18 : vector<128x512xf32>
    %cst_12 = arith.constant dense<0.000000e+00> : vector<128xf32>
    %20 = vector.multi_reduction <add>, %19, %cst_12 [1] : vector<128x512xf32> to vector<128xf32>
    %21 = vector.shape_cast %20 : vector<128xf32> to vector<128x1xf32>
    %cst_13 = arith.constant 5.120000e+02 : f32
    %22 = vector.broadcast %cst_13 : f32 to vector<128x1xf32>
    %23 = arith.divf %21, %22 : vector<128x1xf32>
    %24 = vector.broadcast %16 : vector<128x1xf32> to vector<128x512xf32>
    %25 = arith.subf %12, %24 : vector<128x512xf32>
    %cst_14 = arith.constant 9.99999974E-6 : f32
    %26 = vector.broadcast %cst_14 : f32 to vector<128x1xf32>
    %27 = arith.addf %23, %26 : vector<128x1xf32>
    %28 = math.rsqrt %27 : vector<128x1xf32>
    %29 = vector.broadcast %28 : vector<128x1xf32> to vector<128x512xf32>
    %30 = arith.mulf %25, %29 : vector<128x512xf32>
    %c0_15 = arith.constant 0 : index
    %c0_16 = arith.constant 0 : index
    %31 = vector.load %arg4[%c0_15, %c0_16] : memref<128x1xf32, #tpu.memory_space<vmem>>, vector<128x1xf32>
    %32 = vector.broadcast %31 : vector<128x1xf32> to vector<128x512xf32>
    %33 = arith.mulf %30, %32 : vector<128x512xf32>
    %c0_17 = arith.constant 0 : index
    %c0_18 = arith.constant 0 : index
    %34 = vector.load %arg5[%c0_17, %c0_18] : memref<128x1xf32, #tpu.memory_space<vmem>>, vector<128x1xf32>
    %35 = vector.broadcast %34 : vector<128x1xf32> to vector<128x512xf32>
    %36 = arith.addf %33, %35 : vector<128x512xf32>
    %cst_19 = arith.constant 0.000000e+00 : f32
    %37 = vector.broadcast %cst_19 : f32 to vector<128x512xf32>
    %38 = arith.cmpf ogt, %36, %37 : vector<128x512xf32>
    %cst_20 = arith.constant 2.000000e-01 : f32
    %39 = vector.broadcast %cst_20 : f32 to vector<128x512xf32>
    %40 = arith.mulf %39, %36 : vector<128x512xf32>
    %41 = arith.select %38, %36, %40 : vector<128x512xi1>, vector<128x512xf32>
    %c0_21 = arith.constant 0 : index
    %c0_22 = arith.constant 0 : index
    %42 = vector.load %arg6[%c0_21, %c0_22] : memref<1x128xf32, #tpu.memory_space<vmem>>, vector<1x128xf32>
    %cst_23 = arith.constant dense<0.000000e+00> : vector<1x512xf32>
    %43 = tpu.matmul %42, %41, %cst_23 {dimension_numbers = #tpu.dot_dimension_numbers<[1], [0], [0], [1], [0, 0, 1, 1], [], []>} : vector<1x128xf32>, vector<128x512xf32>, vector<1x512xf32> -> vector<1x512xf32>
    %c0_24 = arith.constant 0 : index
    %c0_25 = arith.constant 0 : index
    %44 = vector.load %arg7[%c0_24, %c0_25] : memref<1x512xf32, #tpu.memory_space<vmem>>, vector<1x512xf32>
    tpu.vector_store %arg7[%c0_24, %c0_25], %43 {strides = array<i32>} : memref<1x512xf32, #tpu.memory_space<vmem>>, vector<1x512xf32>,
    return
  }
}

</mosaic_0001>

<llo_original>
// kernel: pixel_discriminator.1
$region0: #{pixel_discriminator.1}
  #allocation0 [shape = 'u32[]', space=smem, size = 0x4, offset = 0x4, fixed_abs, tag = 'smem constant byte address 0x4 - core index']
  #allocation1 [shape = 'u32[144,128]{1,0:T(1,128)}', space=vmem, size = 0x12000, scoped, tag = 'internal scratch']
  %s0 = inlined_call_operand.vmem [shape: f32[12,512], index: 0, kind: input, shape index: {}]
  %s1 = inlined_call_operand.vmem [shape: f32[64,12], index: 1, kind: input, shape index: {}]
  %s2 = inlined_call_operand.vmem [shape: f32[64,1], index: 2, kind: input, shape index: {}]
  %s3 = inlined_call_operand.vmem [shape: f32[128,64], index: 3, kind: input, shape index: {}]
  %s4 = inlined_call_operand.vmem [shape: f32[128,1], index: 4, kind: input, shape index: {}]
  %s5 = inlined_call_operand.vmem [shape: f32[128,1], index: 5, kind: input, shape index: {}]
  %s6 = inlined_call_operand.vmem [shape: f32[1,128], index: 6, kind: input, shape index: {}]
  %s7 = inlined_call_operand.vmem [shape: f32[1,512], index: 7, kind: output, shape index: {}]
  %s8 = sld [smem:[#allocation0]]
  $region38: #{pixel_discriminator.1} parent=0
    _
  %s10 = ssub.s32 1, %s8
  %s11 = scalar_select 0, %s10, %s8
  // Predicated region
  $region2: #{pixel_discriminator.1} parent=0 // pred_check
    _
  $region3: #{pixel_discriminator.1} parent=0 // pred_check_branch
    %13 = sbr.rel (0) target = $region5
  $region4: #{pixel_discriminator.1} parent=0 // pred_region
    _
  $region5: #{pixel_discriminator.1} parent=0 // pred_fallthru
    _
  // Predicated region
  $region6: #{pixel_discriminator.1} parent=0 // pred_check
    _
  $region7: #{pixel_discriminator.1} parent=0 // pred_check_branch
    %15 = sbr.rel (0) target = $region9
  $region8: #{pixel_discriminator.1} parent=0 // pred_region
    _
  $region9: #{pixel_discriminator.1} parent=0 // pred_fallthru
    _
  // Predicated region
  $region10: #{pixel_discriminator.1} parent=0 // pred_check
    _
  $region11: #{pixel_discriminator.1} parent=0 // pred_check_branch
    %17 = sbr.rel (0) target = $region13
  $region12: #{pixel_discriminator.1} parent=0 // pred_region
    _
  $region13: #{pixel_discriminator.1} parent=0 // pred_fallthru
    _
  // Predicated region
  $region14: #{pixel_discriminator.1} parent=0 // pred_check
    _
  $region15: #{pixel_discriminator.1} parent=0 // pred_check_branch
    %19 = sbr.rel (0) target = $region17
  $region16: #{pixel_discriminator.1} parent=0 // pred_region
    _
  $region17: #{pixel_discriminator.1} parent=0 // pred_fallthru
    _
  // Predicated region
  $region18: #{pixel_discriminator.1} parent=0 // pred_check
    _
  $region19: #{pixel_discriminator.1} parent=0 // pred_check_branch
    %21 = sbr.rel (0) target = $region21
  $region20: #{pixel_discriminator.1} parent=0 // pred_region
    _
  $region21: #{pixel_discriminator.1} parent=0 // pred_fallthru
    _
  // Predicated region
  $region22: #{pixel_discriminator.1} parent=0 // pred_check
    _
  $region23: #{pixel_discriminator.1} parent=0 // pred_check_branch
    %23 = sbr.rel (0) target = $region25
  $region24: #{pixel_discriminator.1} parent=0 // pred_region
    _
  $region25: #{pixel_discriminator.1} parent=0 // pred_fallthru
    _
  // Predicated region
  $region26: #{pixel_discriminator.1} parent=0 // pred_check
    _
  $region27: #{pixel_discriminator.1} parent=0 // pred_check_branch
    %25 = sbr.rel (0) target = $region29
  $region28: #{pixel_discriminator.1} parent=0 // pred_region
    _
  $region29: #{pixel_discriminator.1} parent=0 // pred_fallthru
    _
  %v26 = vld [vmem:[%s0] sm:$0xff]
  %v27 = vld [vmem:[%s0 + $0x8] sm:$0xff]
  %v28 = vld [vmem:[%s0 + $0x10] sm:$0xff]
  %v29 = vld [vmem:[%s0 + $0x18] sm:$0xff]
  %v30 = vld [vmem:[%s0 + $0x20] sm:$0xf]
  %v31 = vld [vmem:[%s0 + $0x28] sm:$0xf]
  %v32 = vld [vmem:[%s0 + $0x30] sm:$0xf]
  %v33 = vld [vmem:[%s0 + $0x38] sm:$0xf]
  %v34 = vld [vmem:[%s1] sm:$0xff]
  %v35 = vld [vmem:[%s1 + $0x8] sm:$0xff]
  %v36 = vld [vmem:[%s1 + $0x10] sm:$0xff]
  %v37 = vld [vmem:[%s1 + $0x18] sm:$0xff]
  %v38 = vld [vmem:[%s1 + $0x20] sm:$0xff]
  %v39 = vld [vmem:[%s1 + $0x28] sm:$0xff]
  %v40 = vld [vmem:[%s1 + $0x30] sm:$0xff]
  %v41 = vld [vmem:[%s1 + $0x38] sm:$0xff]
  %v42 = vld [vmem:[%s2] sm:$0xff]
  %v43 = vld [vmem:[%s2 + $0x8] sm:$0xff]
  %v44 = vld [vmem:[%s2 + $0x10] sm:$0xff]
  %v45 = vld [vmem:[%s2 + $0x18] sm:$0xff]
  %v46 = vld [vmem:[%s2 + $0x20] sm:$0xff]
  %v47 = vld [vmem:[%s2 + $0x28] sm:$0xff]
  %v48 = vld [vmem:[%s2 + $0x30] sm:$0xff]
  %v49 = vld [vmem:[%s2 + $0x38] sm:$0xff]
  %51 = vset.pattern.permute.xlu0 0
  %52 = vperm.xlu0 %51, %v42
  %v53 = vpop.permute.xlu0 %52
  %56 = vset.pattern.permute.xlu0 0
  %57 = vperm.xlu0 %56, %v43
  %v58 = vpop.permute.xlu0 %57
  %61 = vset.pattern.permute.xlu0 0
  %62 = vperm.xlu0 %61, %v44
  %v63 = vpop.permute.xlu0 %62
  %66 = vset.pattern.permute.xlu0 0
  %67 = vperm.xlu0 %66, %v45
  %v68 = vpop.permute.xlu0 %67
  %71 = vset.pattern.permute.xlu0 0
  %72 = vperm.xlu0 %71, %v46
  %v73 = vpop.permute.xlu0 %72
  %76 = vset.pattern.permute.xlu0 0
  %77 = vperm.xlu0 %76, %v47
  %v78 = vpop.permute.xlu0 %77
  %81 = vset.pattern.permute.xlu0 0
  %82 = vperm.xlu0 %81, %v48
  %v83 = vpop.permute.xlu0 %82
  %86 = vset.pattern.permute.xlu0 0
  %87 = vperm.xlu0 %86, %v49
  %v88 = vpop.permute.xlu0 %87
  %vm90 = vcmask 97280
  %v92 = vsel %vm90, %v34, 0
  %v95 = vsel %vm90, %v35, 0
  %v98 = vsel %vm90, %v36, 0
  %v101 = vsel %vm90, %v37, 0
  %v104 = vsel %vm90, %v38, 0
  %v107 = vsel %vm90, %v39, 0
  %v110 = vsel %vm90, %v40, 0
  %v113 = vsel %vm90, %v41, 0
  %vm115 = vcmask 1043456
  %v117 = vsel %vm115, %v30, 0
  %v120 = vsel %vm115, %v31, 0
  %v123 = vsel %vm115, %v32, 0
  %v126 = vsel %vm115, %v33, 0
  %128 = vmatprep.subr.mxu0 %v27
  %129 = vmatpush1.msra.mxu0 %v26
  %130 = vmatprep.subr.mxu0 %v120
  %131 = vmatpush1.msra.mxu0 %v117
  %132 = vmatprep.subr.mxu0 0.0
  %133 = vmatpush1.msra.mxu0 0.0
  %134 = vmatprep.subr.mxu0 0.0
  %135 = vmatpush1.msra.mxu0 0.0
  %136 = vmatprep.subr.mxu0 0.0
  %137 = vmatpush1.msra.mxu0 0.0
  %138 = vmatprep.subr.mxu0 0.0
  %139 = vmatpush1.msra.mxu0 0.0
  %140 = vmatprep.subr.mxu0 0.0
  %141 = vmatpush1.msra.mxu0 0.0
  %142 = vmatprep.subr.mxu0 0.0
  %143 = vmatpush1.msra.mxu0 0.0
  %144 = vmatprep.subr.mxu0 0.0
  %145 = vmatpush1.msra.mxu0 0.0
  %146 = vmatprep.subr.mxu0 0.0
  %147 = vmatpush1.msra.mxu0 0.0
  %148 = vmatprep.subr.mxu0 0.0
  %149 = vmatpush1.msra.mxu0 0.0
  %150 = vmatprep.subr.mxu0 0.0
  %151 = vmatpush1.msra.mxu0 0.0
  %152 = vmatprep.subr.mxu0 0.0
  %153 = vmatpush1.msra.mxu0 0.0
  %154 = vmatprep.subr.mxu0 0.0
  %155 = vmatpush1.msra.mxu0 0.0
  %156 = vmatprep.subr.mxu0 0.0
  %157 = vmatpush1.msra.mxu0 0.0
  %158 = vmatprep.subr.mxu0 0.0
  %159 = vmatpush1.msra.mxu0 0.0
  %160 = vmatprep.subr.mxu0 0.0
  %161 = vmatpush1.msra.mxu0 0.0
  %162 = vmatprep.subr.mxu0 0.0
  %163 = vmatpush1.msra.mxu0 0.0
  %164 = vmatprep.subr.mxu0 0.0
  %165 = vmatpush1.msra.mxu0 0.0
  %166 = vmatprep.subr.mxu0 0.0
  %167 = vmatpush1.msra.mxu0 0.0
  %168 = vmatprep.subr.mxu0 0.0
  %169 = vmatpush1.msra.mxu0 0.0
  %170 = vmatprep.subr.mxu0 0.0
  %171 = vmatpush1.msra.mxu0 0.0
  %172 = vmatprep.subr.mxu0 0.0
  %173 = vmatpush1.msra.mxu0 0.0
  %174 = vmatprep.subr.mxu0 0.0
  %175 = vmatpush1.msra.mxu0 0.0
  %176 = vmatprep.subr.mxu0 0.0
  %177 = vmatpush1.msra.mxu0 0.0
  %178 = vmatprep.subr.mxu0 0.0
  %179 = vmatpush1.msra.mxu0 0.0
  %180 = vmatprep.subr.mxu0 0.0
  %181 = vmatpush1.msra.mxu0 0.0
  %182 = vmatprep.subr.mxu0 0.0
  %183 = vmatpush1.msra.mxu0 0.0
  %184 = vmatprep.subr.mxu0 0.0
  %185 = vmatpush1.msra.mxu0 0.0
  %186 = vmatprep.subr.mxu0 0.0
  %187 = vmatpush1.msra.mxu0 0.0
  %188 = vmatprep.subr.mxu0 0.0
  %189 = vmatpush1.msra.mxu0 0.0
  %190 = vmatprep.subr.mxu0 0.0
  %191 = vmatpush1.msra.mxu0 0.0
  %192 = vmatprep.mubr.f32.mxu0 0.0
  %193 = vmatmul.mubr.f32.gmra.mrb[0].mxu0 %v92
  %v194 = vpop.f32.mrb[0].mxu0
  %v195 = vadd.f32 %v53, %v194
  %v196 = vpop.f32.mrb[0].mxu0
  %v197 = vadd.f32 %v53, %v196
  %198 = vmatprep.mubr.f32.mxu0 0.0
  %199 = vmatmul.mubr.f32.gmra.mrb[0].mxu0 %v95
  %v200 = vpop.f32.mrb[0].mxu0
  %v201 = vadd.f32 %v58, %v200
  %v202 = vpop.f32.mrb[0].mxu0
  %v203 = vadd.f32 %v58, %v202
  %204 = vmatprep.mubr.f32.mxu0 0.0
  %205 = vmatmul.mubr.f32.gmra.mrb[0].mxu0 %v98
  %v206 = vpop.f32.mrb[0].mxu0
  %v207 = vadd.f32 %v63, %v206
  %v208 = vpop.f32.mrb[0].mxu0
  %v209 = vadd.f32 %v63, %v208
  %210 = vmatprep.mubr.f32.mxu0 0.0
  %211 = vmatmul.mubr.f32.gmra.mrb[0].mxu0 %v101
  %v212 = vpop.f32.mrb[0].mxu0
  %v213 = vadd.f32 %v68, %v212
  %v214 = vpop.f32.mrb[0].mxu0
  %v215 = vadd.f32 %v68, %v214
  %216 = vmatprep.mubr.f32.mxu0 0.0
  %217 = vmatmul.mubr.f32.gmra.mrb[0].mxu0 %v104
  %v218 = vpop.f32.mrb[0].mxu0
  %v219 = vadd.f32 %v73, %v218
  %v220 = vpop.f32.mrb[0].mxu0
  %v221 = vadd.f32 %v73, %v220
  %222 = vmatprep.mubr.f32.mxu0 0.0
  %223 = vmatmul.mubr.f32.gmra.mrb[0].mxu0 %v107
  %v224 = vpop.f32.mrb[0].mxu0
  %v225 = vadd.f32 %v78, %v224
  %v226 = vpop.f32.mrb[0].mxu0
  %v227 = vadd.f32 %v78, %v226
  %228 = vmatprep.mubr.f32.mxu0 0.0
  %229 = vmatmul.mubr.f32.gmra.mrb[0].mxu0 %v110
  %v230 = vpop.f32.mrb[0].mxu0
  %v231 = vadd.f32 %v83, %v230
  %v232 = vpop.f32.mrb[0].mxu0
  %v233 = vadd.f32 %v83, %v232
  %234 = vmatprep.mubr.f32.mxu0 0.0
  %235 = vmatmul.mubr.f32.gmra.mrb[0].mxu0 %v113
  %v236 = vpop.f32.mrb[0].mxu0
  %v237 = vadd.f32 %v88, %v236
  %v238 = vpop.f32.mrb[0].mxu0
  %v239 = vadd.f32 %v88, %v238
  %240 = vdwg.mxu0
  %241 = vmatprep.subr.mxu0 %v29
  %242 = vmatpush1.msra.mxu0 %v28
  %243 = vmatprep.subr.mxu0 %v126
  %244 = vmatpush1.msra.mxu0 %v123
  %245 = vmatprep.subr.mxu0 0.0
  %246 = vmatpush1.msra.mxu0 0.0
  %247 = vmatprep.subr.mxu0 0.0
  %248 = vmatpush1.msra.mxu0 0.0
  %249 = vmatprep.subr.mxu0 0.0
  %250 = vmatpush1.msra.mxu0 0.0
  %251 = vmatprep.subr.mxu0 0.0
  %252 = vmatpush1.msra.mxu0 0.0
  %253 = vmatprep.subr.mxu0 0.0
  %254 = vmatpush1.msra.mxu0 0.0
  %255 = vmatprep.subr.mxu0 0.0
  %256 = vmatpush1.msra.mxu0 0.0
  %257 = vmatprep.subr.mxu0 0.0
  %258 = vmatpush1.msra.mxu0 0.0
  %259 = vmatprep.subr.mxu0 0.0
  %260 = vmatpush1.msra.mxu0 0.0
  %261 = vmatprep.subr.mxu0 0.0
  %262 = vmatpush1.msra.mxu0 0.0
  %263 = vmatprep.subr.mxu0 0.0
  %264 = vmatpush1.msra.mxu0 0.0
  %265 = vmatprep.subr.mxu0 0.0
  %266 = vmatpush1.msra.mxu0 0.0
  %267 = vmatprep.subr.mxu0 0.0
  %268 = vmatpush1.msra.mxu0 0.0
  %269 = vmatprep.subr.mxu0 0.0
  %270 = vmatpush1.msra.mxu0 0.0
  %271 = vmatprep.subr.mxu0 0.0
  %272 = vmatpush1.msra.mxu0 0.0
  %273 = vmatprep.subr.mxu0 0.0
  %274 = vmatpush1.msra.mxu0 0.0
  %275 = vmatprep.subr.mxu0 0.0
  %276 = vmatpush1.msra.mxu0 0.0
  %277 = vmatprep.subr.mxu0 0.0
  %278 = vmatpush1.msra.mxu0 0.0
  %279 = vmatprep.subr.mxu0 0.0
  %280 = vmatpush1.msra.mxu0 0.0
  %281 = vmatprep.subr.mxu0 0.0
  %282 = vmatpush1.msra.mxu0 0.0
  %283 = vmatprep.subr.mxu0 0.0
  %284 = vmatpush1.msra.mxu0 0.0
  %285 = vmatprep.subr.mxu0 0.0
  %286 = vmatpush1.msra.mxu0 0.0
  %287 = vmatprep.subr.mxu0 0.0
  %288 = vmatpush1.msra.mxu0 0.0
  %289 = vmatprep.subr.mxu0 0.0
  %290 = vmatpush1.msra.mxu0 0.0
  %291 = vmatprep.subr.mxu0 0.0
  %292 = vmatpush1.msra.mxu0 0.0
  %293 = vmatprep.subr.mxu0 0.0
  %294 = vmatpush1.msra.mxu0 0.0
  %295 = vmatprep.subr.mxu0 0.0
  %296 = vmatpush1.msra.mxu0 0.0
  %297 = vmatprep.subr.mxu0 0.0
  %298 = vmatpush1.msra.mxu0 0.0
  %299 = vmatprep.subr.mxu0 0.0
  %300 = vmatpush1.msra.mxu0 0.0
  %301 = vmatprep.subr.mxu0 0.0
  %302 = vmatpush1.msra.mxu0 0.0
  %303 = vmatprep.subr.mxu0 0.0
  %304 = vmatpush1.msra.mxu0 0.0
  %305 = vmatprep.mubr.f32.mxu0 0.0
  %306 = vmatmul.mubr.f32.gmra.mrb[0].mxu0 %v92
  %v307 = vpop.f32.mrb[0].mxu0
  %v308 = vadd.f32 %v53, %v307
  %v309 = vpop.f32.mrb[0].mxu0
  %v310 = vadd.f32 %v53, %v309
  %311 = vmatprep.mubr.f32.mxu0 0.0
  %312 = vmatmul.mubr.f32.gmra.mrb[0].mxu0 %v95
  %v313 = vpop.f32.mrb[0].mxu0
  %v314 = vadd.f32 %v58, %v313
  %v315 = vpop.f32.mrb[0].mxu0
  %v316 = vadd.f32 %v58, %v315
  %317 = vmatprep.mubr.f32.mxu0 0.0
  %318 = vmatmul.mubr.f32.gmra.mrb[0].mxu0 %v98
  %v319 = vpop.f32.mrb[0].mxu0
  %v320 = vadd.f32 %v63, %v319
  %v321 = vpop.f32.mrb[0].mxu0
  %v322 = vadd.f32 %v63, %v321
  %323 = vmatprep.mubr.f32.mxu0 0.0
  %324 = vmatmul.mubr.f32.gmra.mrb[0].mxu0 %v101
  %v325 = vpop.f32.mrb[0].mxu0
  %v326 = vadd.f32 %v68, %v325
  %v327 = vpop.f32.mrb[0].mxu0
  %v328 = vadd.f32 %v68, %v327
  %329 = vmatprep.mubr.f32.mxu0 0.0
  %330 = vmatmul.mubr.f32.gmra.mrb[0].mxu0 %v104
  %v331 = vpop.f32.mrb[0].mxu0
  %v332 = vadd.f32 %v73, %v331
  %v333 = vpop.f32.mrb[0].mxu0
  %v334 = vadd.f32 %v73, %v333
  %335 = vmatprep.mubr.f32.mxu0 0.0
  %336 = vmatmul.mubr.f32.gmra.mrb[0].mxu0 %v107
  %v337 = vpop.f32.mrb[0].mxu0
  %v338 = vadd.f32 %v78, %v337
  %v339 = vpop.f32.mrb[0].mxu0
  %v340 = vadd.f32 %v78, %v339
  %341 = vmatprep.mubr.f32.mxu0 0.0
  %342 = vmatmul.mubr.f32.gmra.mrb[0].mxu0 %v110
  %v343 = vpop.f32.mrb[0].mxu0
  %v344 = vadd.f32 %v83, %v343
  %v345 = vpop.f32.mrb[0].mxu0
  %v346 = vadd.f32 %v83, %v345
  %347 = vmatprep.mubr.f32.mxu0 0.0
  %348 = vmatmul.mubr.f32.gmra.mrb[0].mxu0 %v113
  %v349 = vpop.f32.mrb[0].mxu0
  %v350 = vadd.f32 %v88, %v349
  %v351 = vpop.f32.mrb[0].mxu0
  %v352 = vadd.f32 %v88, %v351
  %353 = vdwg.mxu0
  %vm354 = vcmp.gt.f32.partialorder %v195, 0.0
  %vm355 = vcmp.gt.f32.partialorder %v197, 0.0
  %vm356 = vcmp.gt.f32.partialorder %v308, 0.0
  %vm357 = vcmp.gt.f32.partialorder %v310, 0.0
  %vm358 = vcmp.gt.f32.partialorder %v201, 0.0
  %vm359 = vcmp.gt.f32.partialorder %v203, 0.0
  %vm360 = vcmp.gt.f32.partialorder %v314, 0.0
  %vm361 = vcmp.gt.f32.partialorder %v316, 0.0
  %vm362 = vcmp.gt.f32.partialorder %v207, 0.0
  %vm363 = vcmp.gt.f32.partialorder %v209, 0.0
  %vm364 = vcmp.gt.f32.partialorder %v320, 0.0
  %vm365 = vcmp.gt.f32.partialorder %v322, 0.0
  %vm366 = vcmp.gt.f32.partialorder %v213, 0.0
  %vm367 = vcmp.gt.f32.partialorder %v215, 0.0
  %vm368 = vcmp.gt.f32.partialorder %v326, 0.0
  %vm369 = vcmp.gt.f32.partialorder %v328, 0.0
  %vm370 = vcmp.gt.f32.partialorder %v219, 0.0
  %vm371 = vcmp.gt.f32.partialorder %v221, 0.0
  %vm372 = vcmp.gt.f32.partialorder %v332, 0.0
  %vm373 = vcmp.gt.f32.partialorder %v334, 0.0
  %vm374 = vcmp.gt.f32.partialorder %v225, 0.0
  %vm375 = vcmp.gt.f32.partialorder %v227, 0.0
  %vm376 = vcmp.gt.f32.partialorder %v338, 0.0
  %vm377 = vcmp.gt.f32.partialorder %v340, 0.0
  %vm378 = vcmp.gt.f32.partialorder %v231, 0.0
  %vm379 = vcmp.gt.f32.partialorder %v233, 0.0
  %vm380 = vcmp.gt.f32.partialorder %v344, 0.0
  %vm381 = vcmp.gt.f32.partialorder %v346, 0.0
  %vm382 = vcmp.gt.f32.partialorder %v237, 0.0
  %vm383 = vcmp.gt.f32.partialorder %v239, 0.0
  %vm384 = vcmp.gt.f32.partialorder %v350, 0.0
  %vm385 = vcmp.gt.f32.partialorder %v352, 0.0
  %v386 = vmul.f32 %v195, 0.2
  %v387 = vmul.f32 %v197, 0.2
  %v388 = vmul.f32 %v308, 0.2
  %v389 = vmul.f32 %v310, 0.2
  %v390 = vmul.f32 %v201, 0.2
  %v391 = vmul.f32 %v203, 0.2
  %v392 = vmul.f32 %v314, 0.2
  %v393 = vmul.f32 %v316, 0.2
  %v394 = vmul.f32 %v207, 0.2
  %v395 = vmul.f32 %v209, 0.2
  %v396 = vmul.f32 %v320, 0.2
  %v397 = vmul.f32 %v322, 0.2
  %v398 = vmul.f32 %v213, 0.2
  %v399 = vmul.f32 %v215, 0.2
  %v400 = vmul.f32 %v326, 0.2
  %v401 = vmul.f32 %v328, 0.2
  %v402 = vmul.f32 %v219, 0.2
  %v403 = vmul.f32 %v221, 0.2
  %v404 = vmul.f32 %v332, 0.2
  %v405 = vmul.f32 %v334, 0.2
  %v406 = vmul.f32 %v225, 0.2
  %v407 = vmul.f32 %v227, 0.2
  %v408 = vmul.f32 %v338, 0.2
  %v409 = vmul.f32 %v340, 0.2
  %v410 = vmul.f32 %v231, 0.2
  %v411 = vmul.f32 %v233, 0.2
  %v412 = vmul.f32 %v344, 0.2
  %v413 = vmul.f32 %v346, 0.2
  %v414 = vmul.f32 %v237, 0.2
  %v415 = vmul.f32 %v239, 0.2
  %v416 = vmul.f32 %v350, 0.2
  %v417 = vmul.f32 %v352, 0.2
  %v418 = vsel %vm354, %v195, %v386
  %v419 = vsel %vm355, %v197, %v387
  %v420 = vsel %vm356, %v308, %v388
  %v421 = vsel %vm357, %v310, %v389
  %v422 = vsel %vm358, %v201, %v390
  %v423 = vsel %vm359, %v203, %v391
  %v424 = vsel %vm360, %v314, %v392
  %v425 = vsel %vm361, %v316, %v393
  %v426 = vsel %vm362, %v207, %v394
  %v427 = vsel %vm363, %v209, %v395
  %v428 = vsel %vm364, %v320, %v396
  %v429 = vsel %vm365, %v322, %v397
  %v430 = vsel %vm366, %v213, %v398
  %v431 = vsel %vm367, %v215, %v399
  %v432 = vsel %vm368, %v326, %v400
  %v433 = vsel %vm369, %v328, %v401
  %v434 = vsel %vm370, %v219, %v402
  %v435 = vsel %vm371, %v221, %v403
  %v436 = vsel %vm372, %v332, %v404
  %v437 = vsel %vm373, %v334, %v405
  %v438 = vsel %vm374, %v225, %v406
  %v439 = vsel %vm375, %v227, %v407
  %v440 = vsel %vm376, %v338, %v408
  %v441 = vsel %vm377, %v340, %v409
  %v442 = vsel %vm378, %v231, %v410
  %v443 = vsel %vm379, %v233, %v411
  %v444 = vsel %vm380, %v344, %v412
  %v445 = vsel %vm381, %v346, %v413
  %v446 = vsel %vm382, %v237, %v414
  %v447 = vsel %vm383, %v239, %v415
  %v448 = vsel %vm384, %v350, %v416
  %v449 = vsel %vm385, %v352, %v417
  %v450 = vld [vmem:[%s3] sm:$0xff]
  %v451 = vld [vmem:[%s3 + $0x8] sm:$0xff]
  %v452 = vld [vmem:[%s3 + $0x10] sm:$0xff]
  %v453 = vld [vmem:[%s3 + $0x18] sm:$0xff]
  %v454 = vld [vmem:[%s3 + $0x20] sm:$0xff]
  %v455 = vld [vmem:[%s3 + $0x28] sm:$0xff]
  %v456 = vld [vmem:[%s3 + $0x30] sm:$0xff]
  %v457 = vld [vmem:[%s3 + $0x38] sm:$0xff]
  %v458 = vld [vmem:[%s3 + $0x40] sm:$0xff]
  %v459 = vld [vmem:[%s3 + $0x48] sm:$0xff]
  %v460 = vld [vmem:[%s3 + $0x50] sm:$0xff]
  %v461 = vld [vmem:[%s3 + $0x58] sm:$0xff]
  %v462 = vld [vmem:[%s3 + $0x60] sm:$0xff]
  %v463 = vld [vmem:[%s3 + $0x68] sm:$0xff]
  %v464 = vld [vmem:[%s3 + $0x70] sm:$0xff]
  %v465 = vld [vmem:[%s3 + $0x78] sm:$0xff]
  %vm466 = vcmask 523264
  %v468 = vsel %vm466, %v450, 0
  %v471 = vsel %vm466, %v451, 0
  %v474 = vsel %vm466, %v452, 0
  %v477 = vsel %vm466, %v453, 0
  %v480 = vsel %vm466, %v454, 0
  %v483 = vsel %vm466, %v455, 0
  %v486 = vsel %vm466, %v456, 0
  %v489 = vsel %vm466, %v457, 0
  %v492 = vsel %vm466, %v458, 0
  %v495 = vsel %vm466, %v459, 0
  %v498 = vsel %vm466, %v460, 0
  %v501 = vsel %vm466, %v461, 0
  %v504 = vsel %vm466, %v462, 0
  %v507 = vsel %vm466, %v463, 0
  %v510 = vsel %vm466, %v464, 0
  %v513 = vsel %vm466, %v465, 0
  %515 = vmatprep.subr.mxu0 %v419
  %516 = vmatpush1.msra.mxu0 %v418
  %517 = vmatprep.subr.mxu0 %v423
  %518 = vmatpush1.msra.mxu0 %v422
  %519 = vmatprep.subr.mxu0 %v427
  %520 = vmatpush1.msra.mxu0 %v426
  %521 = vmatprep.subr.mxu0 %v431
  %522 = vmatpush1.msra.mxu0 %v430
  %523 = vmatprep.subr.mxu0 %v435
  %524 = vmatpush1.msra.mxu0 %v434
  %525 = vmatprep.subr.mxu0 %v439
  %526 = vmatpush1.msra.mxu0 %v438
  %527 = vmatprep.subr.mxu0 %v443
  %528 = vmatpush1.msra.mxu0 %v442
  %529 = vmatprep.subr.mxu0 %v447
  %530 = vmatpush1.msra.mxu0 %v446
  %531 = vmatprep.subr.mxu0 0.0
  %532 = vmatpush1.msra.mxu0 0.0
  %533 = vmatprep.subr.mxu0 0.0
  %534 = vmatpush1.msra.mxu0 0.0
  %535 = vmatprep.subr.mxu0 0.0
  %536 = vmatpush1.msra.mxu0 0.0
  %537 = vmatprep.subr.mxu0 0.0
  %538 = vmatpush1.msra.mxu0 0.0
  %539 = vmatprep.subr.mxu0 0.0
  %540 = vmatpush1.msra.mxu0 0.0
  %541 = vmatprep.subr.mxu0 0.0
  %542 = vmatpush1.msra.mxu0 0.0
  %543 = vmatprep.subr.mxu0 0.0
  %544 = vmatpush1.msra.mxu0 0.0
  %545 = vmatprep.subr.mxu0 0.0
  %546 = vmatpush1.msra.mxu0 0.0
  %547 = vmatprep.subr.mxu0 0.0
  %548 = vmatpush1.msra.mxu0 0.0
  %549 = vmatprep.subr.mxu0 0.0
  %550 = vmatpush1.msra.mxu0 0.0
  %551 = vmatprep.subr.mxu0 0.0
  %552 = vmatpush1.msra.mxu0 0.0
  %553 = vmatprep.subr.mxu0 0.0
  %554 = vmatpush1.msra.mxu0 0.0
  %555 = vmatprep.subr.mxu0 0.0
  %556 = vmatpush1.msra.mxu0 0.0
  %557 = vmatprep.subr.mxu0 0.0
  %558 = vmatpush1.msra.mxu0 0.0
  %559 = vmatprep.subr.mxu0 0.0
  %560 = vmatpush1.msra.mxu0 0.0
  %561 = vmatprep.subr.mxu0 0.0
  %562 = vmatpush1.msra.mxu0 0.0
  %563 = vmatprep.subr.mxu0 0.0
  %564 = vmatpush1.msra.mxu0 0.0
  %565 = vmatprep.subr.mxu0 0.0
  %566 = vmatpush1.msra.mxu0 0.0
  %567 = vmatprep.subr.mxu0 0.0
  %568 = vmatpush1.msra.mxu0 0.0
  %569 = vmatprep.subr.mxu0 0.0
  %570 = vmatpush1.msra.mxu0 0.0
  %571 = vmatprep.subr.mxu0 0.0
  %572 = vmatpush1.msra.mxu0 0.0
  %573 = vmatprep.subr.mxu0 0.0
  %574 = vmatpush1.msra.mxu0 0.0
  %575 = vmatprep.subr.mxu0 0.0
  %576 = vmatpush1.msra.mxu0 0.0
  %577 = vmatprep.subr.mxu0 0.0
  %578 = vmatpush1.msra.mxu0 0.0
  %579 = vmatprep.mubr.f32.mxu0 0.0
  %580 = vmatmul.mubr.f32.gmra.mrb[0].mxu0 %v468
  %v581 = vpop.f32.mrb[0].mxu0
  %v582 = vadd.f32 0.0, %v581
  %v583 = vpop.f32.mrb[0].mxu0
  %v584 = vadd.f32 0.0, %v583
  %585 = vmatprep.mubr.f32.mxu0 0.0
  %586 = vmatmul.mubr.f32.gmra.mrb[0].mxu0 %v471
  %v587 = vpop.f32.mrb[0].mxu0
  %v588 = vadd.f32 0.0, %v587
  %v589 = vpop.f32.mrb[0].mxu0
  %v590 = vadd.f32 0.0, %v589
  %591 = vmatprep.mubr.f32.mxu0 0.0
  %592 = vmatmul.mubr.f32.gmra.mrb[0].mxu0 %v474
  %v593 = vpop.f32.mrb[0].mxu0
  %v594 = vadd.f32 0.0, %v593
  %v595 = vpop.f32.mrb[0].mxu0
  %v596 = vadd.f32 0.0, %v595
  %597 = vmatprep.mubr.f32.mxu0 0.0
  %598 = vmatmul.mubr.f32.gmra.mrb[0].mxu0 %v477
  %v599 = vpop.f32.mrb[0].mxu0
  %v600 = vadd.f32 0.0, %v599
  %v601 = vpop.f32.mrb[0].mxu0
  %v602 = vadd.f32 0.0, %v601
  %603 = vmatprep.mubr.f32.mxu0 0.0
  %604 = vmatmul.mubr.f32.gmra.mrb[0].mxu0 %v480
  %v605 = vpop.f32.mrb[0].mxu0
  %v606 = vadd.f32 0.0, %v605
  %v607 = vpop.f32.mrb[0].mxu0
  %v608 = vadd.f32 0.0, %v607
  %609 = vmatprep.mubr.f32.mxu0 0.0
  %610 = vmatmul.mubr.f32.gmra.mrb[0].mxu0 %v483
  %v611 = vpop.f32.mrb[0].mxu0
  %v612 = vadd.f32 0.0, %v611
  %v613 = vpop.f32.mrb[0].mxu0
  %v614 = vadd.f32 0.0, %v613
  %615 = vmatprep.mubr.f32.mxu0 0.0
  %616 = vmatmul.mubr.f32.gmra.mrb[0].mxu0 %v486
  %v617 = vpop.f32.mrb[0].mxu0
  %v618 = vadd.f32 0.0, %v617
  %v619 = vpop.f32.mrb[0].mxu0
  %v620 = vadd.f32 0.0, %v619
  %621 = vmatprep.mubr.f32.mxu0 0.0
  %622 = vmatmul.mubr.f32.gmra.mrb[0].mxu0 %v489
  %v623 = vpop.f32.mrb[0].mxu0
  %v624 = vadd.f32 0.0, %v623
  %v625 = vpop.f32.mrb[0].mxu0
  %v626 = vadd.f32 0.0, %v625
  %627 = vmatprep.mubr.f32.mxu0 0.0
  %628 = vmatmul.mubr.f32.gmra.mrb[0].mxu0 %v492
  %v629 = vpop.f32.mrb[0].mxu0
  %v630 = vadd.f32 0.0, %v629
  %v631 = vpop.f32.mrb[0].mxu0
  %v632 = vadd.f32 0.0, %v631
  %633 = vmatprep.mubr.f32.mxu0 0.0
  %634 = vmatmul.mubr.f32.gmra.mrb[0].mxu0 %v495
  %v635 = vpop.f32.mrb[0].mxu0
  %v636 = vadd.f32 0.0, %v635
  %v637 = vpop.f32.mrb[0].mxu0
  %v638 = vadd.f32 0.0, %v637
  %639 = vmatprep.mubr.f32.mxu0 0.0
  %640 = vmatmul.mubr.f32.gmra.mrb[0].mxu0 %v498
  %v641 = vpop.f32.mrb[0].mxu0
  %v642 = vadd.f32 0.0, %v641
  %v643 = vpop.f32.mrb[0].mxu0
  %v644 = vadd.f32 0.0, %v643
  %645 = vmatprep.mubr.f32.mxu0 0.0
  %646 = vmatmul.mubr.f32.gmra.mrb[0].mxu0 %v501
  %v647 = vpop.f32.mrb[0].mxu0
  %v648 = vadd.f32 0.0, %v647
  %v649 = vpop.f32.mrb[0].mxu0
  %v650 = vadd.f32 0.0, %v649
  %651 = vmatprep.mubr.f32.mxu0 0.0
  %652 = vmatmul.mubr.f32.gmra.mrb[0].mxu0 %v504
  %v653 = vpop.f32.mrb[0].mxu0
  %v654 = vadd.f32 0.0, %v653
  %v655 = vpop.f32.mrb[0].mxu0
  %v656 = vadd.f32 0.0, %v655
  %657 = vmatprep.mubr.f32.mxu0 0.0
  %658 = vmatmul.mubr.f32.gmra.mrb[0].mxu0 %v507
  %v659 = vpop.f32.mrb[0].mxu0
  %v660 = vadd.f32 0.0, %v659
  %v661 = vpop.f32.mrb[0].mxu0
  %v662 = vadd.f32 0.0, %v661
  %663 = vmatprep.mubr.f32.mxu0 0.0
  %664 = vmatmul.mubr.f32.gmra.mrb[0].mxu0 %v510
  %v665 = vpop.f32.mrb[0].mxu0
  %v666 = vadd.f32 0.0, %v665
  %v667 = vpop.f32.mrb[0].mxu0
  %v668 = vadd.f32 0.0, %v667
  %669 = vmatprep.mubr.f32.mxu0 0.0
  %670 = vmatmul.mubr.f32.gmra.mrb[0].mxu0 %v513
  %v671 = vpop.f32.mrb[0].mxu0
  %v672 = vadd.f32 0.0, %v671
  %v673 = vpop.f32.mrb[0].mxu0
  %v674 = vadd.f32 0.0, %v673
  %675 = vdwg.mxu0
  %676 = vmatprep.subr.mxu0 %v421
  %677 = vmatpush1.msra.mxu0 %v420
  %678 = vmatprep.subr.mxu0 %v425
  %679 = vmatpush1.msra.mxu0 %v424
  %680 = vmatprep.subr.mxu0 %v429
  %681 = vmatpush1.msra.mxu0 %v428
  %682 = vmatprep.subr.mxu0 %v433
  %683 = vmatpush1.msra.mxu0 %v432
  %684 = vmatprep.subr.mxu0 %v437
  %685 = vmatpush1.msra.mxu0 %v436
  %686 = vmatprep.subr.mxu0 %v441
  %687 = vmatpush1.msra.mxu0 %v440
  %688 = vmatprep.subr.mxu0 %v445
  %689 = vmatpush1.msra.mxu0 %v444
  %690 = vmatprep.subr.mxu0 %v449
  %691 = vmatpush1.msra.mxu0 %v448
  %692 = vmatprep.subr.mxu0 0.0
  %693 = vmatpush1.msra.mxu0 0.0
  %694 = vmatprep.subr.mxu0 0.0
  %695 = vmatpush1.msra.mxu0 0.0
  %696 = vmatprep.subr.mxu0 0.0
  %697 = vmatpush1.msra.mxu0 0.0
  %698 = vmatprep.subr.mxu0 0.0
  %699 = vmatpush1.msra.mxu0 0.0
  %700 = vmatprep.subr.mxu0 0.0
  %701 = vmatpush1.msra.mxu0 0.0
  %702 = vmatprep.subr.mxu0 0.0
  %703 = vmatpush1.msra.mxu0 0.0
  %704 = vmatprep.subr.mxu0 0.0
  %705 = vmatpush1.msra.mxu0 0.0
  %706 = vmatprep.subr.mxu0 0.0
  %707 = vmatpush1.msra.mxu0 0.0
  %708 = vmatprep.subr.mxu0 0.0
  %709 = vmatpush1.msra.mxu0 0.0
  %710 = vmatprep.subr.mxu0 0.0
  %711 = vmatpush1.msra.mxu0 0.0
  %712 = vmatprep.subr.mxu0 0.0
  %713 = vmatpush1.msra.mxu0 0.0
  %714 = vmatprep.subr.mxu0 0.0
  %715 = vmatpush1.msra.mxu0 0.0
  %716 = vmatprep.subr.mxu0 0.0
  %717 = vmatpush1.msra.mxu0 0.0
  %718 = vmatprep.subr.mxu0 0.0
  %719 = vmatpush1.msra.mxu0 0.0
  %720 = vmatprep.subr.mxu0 0.0
  %721 = vmatpush1.msra.mxu0 0.0
  %722 = vmatprep.subr.mxu0 0.0
  %723 = vmatpush1.msra.mxu0 0.0
  %724 = vmatprep.subr.mxu0 0.0
  %725 = vmatpush1.msra.mxu0 0.0
  %726 = vmatprep.subr.mxu0 0.0
  %727 = vmatpush1.msra.mxu0 0.0
  %728 = vmatprep.subr.mxu0 0.0
  %729 = vmatpush1.msra.mxu0 0.0
  %730 = vmatprep.subr.mxu0 0.0
  %731 = vmatpush1.msra.mxu0 0.0
  %732 = vmatprep.subr.mxu0 0.0
  %733 = vmatpush1.msra.mxu0 0.0
  %734 = vmatprep.subr.mxu0 0.0
  %735 = vmatpush1.msra.mxu0 0.0
  %736 = vmatprep.subr.mxu0 0.0
  %737 = vmatpush1.msra.mxu0 0.0
  %738 = vmatprep.subr.mxu0 0.0
  %739 = vmatpush1.msra.mxu0 0.0
  %740 = vmatprep.mubr.f32.mxu0 0.0
  %741 = vmatmul.mubr.f32.gmra.mrb[0].mxu0 %v468
  %v742 = vpop.f32.mrb[0].mxu0
  %v743 = vadd.f32 0.0, %v742
  %v744 = vpop.f32.mrb[0].mxu0
  %v745 = vadd.f32 0.0, %v744
  %746 = vmatprep.mubr.f32.mxu0 0.0
  %747 = vmatmul.mubr.f32.gmra.mrb[0].mxu0 %v471
  %v748 = vpop.f32.mrb[0].mxu0
  %v749 = vadd.f32 0.0, %v748
  %v750 = vpop.f32.mrb[0].mxu0
  %v751 = vadd.f32 0.0, %v750
  %752 = vmatprep.mubr.f32.mxu0 0.0
  %753 = vmatmul.mubr.f32.gmra.mrb[0].mxu0 %v474
  %v754 = vpop.f32.mrb[0].mxu0
  %v755 = vadd.f32 0.0, %v754
  %v756 = vpop.f32.mrb[0].mxu0
  %v757 = vadd.f32 0.0, %v756
  %758 = vmatprep.mubr.f32.mxu0 0.0
  %759 = vmatmul.mubr.f32.gmra.mrb[0].mxu0 %v477
  %v760 = vpop.f32.mrb[0].mxu0
  %v761 = vadd.f32 0.0, %v760
  %v762 = vpop.f32.mrb[0].mxu0
  %v763 = vadd.f32 0.0, %v762
  %764 = vmatprep.mubr.f32.mxu0 0.0
  %765 = vmatmul.mubr.f32.gmra.mrb[0].mxu0 %v480
  %v766 = vpop.f32.mrb[0].mxu0
  %v767 = vadd.f32 0.0, %v766
  %v768 = vpop.f32.mrb[0].mxu0
  %v769 = vadd.f32 0.0, %v768
  %770 = vmatprep.mubr.f32.mxu0 0.0
  %771 = vmatmul.mubr.f32.gmra.mrb[0].mxu0 %v483
  %v772 = vpop.f32.mrb[0].mxu0
  %v773 = vadd.f32 0.0, %v772
  %v774 = vpop.f32.mrb[0].mxu0
  %v775 = vadd.f32 0.0, %v774
  %776 = vmatprep.mubr.f32.mxu0 0.0
  %777 = vmatmul.mubr.f32.gmra.mrb[0].mxu0 %v486
  %v778 = vpop.f32.mrb[0].mxu0
  %v779 = vadd.f32 0.0, %v778
  %v780 = vpop.f32.mrb[0].mxu0
  %v781 = vadd.f32 0.0, %v780
  %782 = vmatprep.mubr.f32.mxu0 0.0
  %783 = vmatmul.mubr.f32.gmra.mrb[0].mxu0 %v489
  %v784 = vpop.f32.mrb[0].mxu0
  %v785 = vadd.f32 0.0, %v784
  %v786 = vpop.f32.mrb[0].mxu0
  %v787 = vadd.f32 0.0, %v786
  %788 = vmatprep.mubr.f32.mxu0 0.0
  %789 = vmatmul.mubr.f32.gmra.mrb[0].mxu0 %v492
  %v790 = vpop.f32.mrb[0].mxu0
  %v791 = vadd.f32 0.0, %v790
  %v792 = vpop.f32.mrb[0].mxu0
  %v793 = vadd.f32 0.0, %v792
  %794 = vmatprep.mubr.f32.mxu0 0.0
  %795 = vmatmul.mubr.f32.gmra.mrb[0].mxu0 %v495
  %v796 = vpop.f32.mrb[0].mxu0
  %v797 = vadd.f32 0.0, %v796
  %v798 = vpop.f32.mrb[0].mxu0
  %v799 = vadd.f32 0.0, %v798
  %800 = vmatprep.mubr.f32.mxu0 0.0
  %801 = vmatmul.mubr.f32.gmra.mrb[0].mxu0 %v498
  %v802 = vpop.f32.mrb[0].mxu0
  %v803 = vadd.f32 0.0, %v802
  %v804 = vpop.f32.mrb[0].mxu0
  %v805 = vadd.f32 0.0, %v804
  %806 = vmatprep.mubr.f32.mxu0 0.0
  %807 = vmatmul.mubr.f32.gmra.mrb[0].mxu0 %v501
  %v808 = vpop.f32.mrb[0].mxu0
  %v809 = vadd.f32 0.0, %v808
  %v810 = vpop.f32.mrb[0].mxu0
  %v811 = vadd.f32 0.0, %v810
  %812 = vmatprep.mubr.f32.mxu0 0.0
  %813 = vmatmul.mubr.f32.gmra.mrb[0].mxu0 %v504
  %v814 = vpop.f32.mrb[0].mxu0
  %v815 = vadd.f32 0.0, %v814
  %v816 = vpop.f32.mrb[0].mxu0
  %v817 = vadd.f32 0.0, %v816
  %818 = vmatprep.mubr.f32.mxu0 0.0
  %819 = vmatmul.mubr.f32.gmra.mrb[0].mxu0 %v507
  %v820 = vpop.f32.mrb[0].mxu0
  %v821 = vadd.f32 0.0, %v820
  %v822 = vpop.f32.mrb[0].mxu0
  %v823 = vadd.f32 0.0, %v822
  %824 = vmatprep.mubr.f32.mxu0 0.0
  %825 = vmatmul.mubr.f32.gmra.mrb[0].mxu0 %v510
  %v826 = vpop.f32.mrb[0].mxu0
  %v827 = vadd.f32 0.0, %v826
  %v828 = vpop.f32.mrb[0].mxu0
  %v829 = vadd.f32 0.0, %v828
  %830 = vmatprep.mubr.f32.mxu0 0.0
  %831 = vmatmul.mubr.f32.gmra.mrb[0].mxu0 %v513
  %v832 = vpop.f32.mrb[0].mxu0
  %v833 = vadd.f32 0.0, %v832
  %v834 = vpop.f32.mrb[0].mxu0
  %v835 = vadd.f32 0.0, %v834
  %836 = vdwg.mxu0
  %v837 = vadd.f32 %v582, %v584
  %v838 = vadd.f32 %v837, %v743
  %v839 = vadd.f32 %v838, %v745
  %840 = vadd.xlane.f32.xlu0 %v839
  %v841 = vpop.xlane.xlu0 %840
  %v842 = vadd.f32 %v588, %v590
  %v843 = vadd.f32 %v842, %v749
  %v844 = vadd.f32 %v843, %v751
  %845 = vadd.xlane.f32.xlu0 %v844
  %v846 = vpop.xlane.xlu0 %845
  %v847 = vadd.f32 %v594, %v596
  %v848 = vadd.f32 %v847, %v755
  %v849 = vadd.f32 %v848, %v757
  %850 = vadd.xlane.f32.xlu0 %v849
  %v851 = vpop.xlane.xlu0 %850
  %v852 = vadd.f32 %v600, %v602
  %v853 = vadd.f32 %v852, %v761
  %v854 = vadd.f32 %v853, %v763
  %855 = vadd.xlane.f32.xlu0 %v854
  %v856 = vpop.xlane.xlu0 %855
  %v857 = vadd.f32 %v606, %v608
  %v858 = vadd.f32 %v857, %v767
  %v859 = vadd.f32 %v858, %v769
  %860 = vadd.xlane.f32.xlu0 %v859
  %v861 = vpop.xlane.xlu0 %860
  %v862 = vadd.f32 %v612, %v614
  %v863 = vadd.f32 %v862, %v773
  %v864 = vadd.f32 %v863, %v775
  %865 = vadd.xlane.f32.xlu0 %v864
  %v866 = vpop.xlane.xlu0 %865
  %v867 = vadd.f32 %v618, %v620
  %v868 = vadd.f32 %v867, %v779
  %v869 = vadd.f32 %v868, %v781
  %870 = vadd.xlane.f32.xlu0 %v869
  %v871 = vpop.xlane.xlu0 %870
  %v872 = vadd.f32 %v624, %v626
  %v873 = vadd.f32 %v872, %v785
  %v874 = vadd.f32 %v873, %v787
  %875 = vadd.xlane.f32.xlu0 %v874
  %v876 = vpop.xlane.xlu0 %875
  %v877 = vadd.f32 %v630, %v632
  %v878 = vadd.f32 %v877, %v791
  %v879 = vadd.f32 %v878, %v793
  %880 = vadd.xlane.f32.xlu0 %v879
  %v881 = vpop.xlane.xlu0 %880
  %v882 = vadd.f32 %v636, %v638
  %v883 = vadd.f32 %v882, %v797
  %v884 = vadd.f32 %v883, %v799
  %885 = vadd.xlane.f32.xlu0 %v884
  %v886 = vpop.xlane.xlu0 %885
  %v887 = vadd.f32 %v642, %v644
  %v888 = vadd.f32 %v887, %v803
  %v889 = vadd.f32 %v888, %v805
  %890 = vadd.xlane.f32.xlu0 %v889
  %v891 = vpop.xlane.xlu0 %890
  %v892 = vadd.f32 %v648, %v650
  %v893 = vadd.f32 %v892, %v809
  %v894 = vadd.f32 %v893, %v811
  %895 = vadd.xlane.f32.xlu0 %v894
  %v896 = vpop.xlane.xlu0 %895
  %v897 = vadd.f32 %v654, %v656
  %v898 = vadd.f32 %v897, %v815
  %v899 = vadd.f32 %v898, %v817
  %900 = vadd.xlane.f32.xlu0 %v899
  %v901 = vpop.xlane.xlu0 %900
  %v902 = vadd.f32 %v660, %v662
  %v903 = vadd.f32 %v902, %v821
  %v904 = vadd.f32 %v903, %v823
  %905 = vadd.xlane.f32.xlu0 %v904
  %v906 = vpop.xlane.xlu0 %905
  %v907 = vadd.f32 %v666, %v668
  %v908 = vadd.f32 %v907, %v827
  %v909 = vadd.f32 %v908, %v829
  %910 = vadd.xlane.f32.xlu0 %v909
  %v911 = vpop.xlane.xlu0 %910
  %v912 = vadd.f32 %v672, %v674
  %v913 = vadd.f32 %v912, %v833
  %v914 = vadd.f32 %v913, %v835
  %915 = vadd.xlane.f32.xlu0 %v914
  %v916 = vpop.xlane.xlu0 %915
  %v917 = vrcp.pop 512.0
  %v918 = vmul.f32 %v841, %v917
  %v919 = vmul.f32 %v846, %v917
  %v920 = vmul.f32 %v851, %v917
  %v921 = vmul.f32 %v856, %v917
  %v922 = vmul.f32 %v861, %v917
  %v923 = vmul.f32 %v866, %v917
  %v924 = vmul.f32 %v871, %v917
  %v925 = vmul.f32 %v876, %v917
  %v926 = vmul.f32 %v881, %v917
  %v927 = vmul.f32 %v886, %v917
  %v928 = vmul.f32 %v891, %v917
  %v929 = vmul.f32 %v896, %v917
  %v930 = vmul.f32 %v901, %v917
  %v931 = vmul.f32 %v906, %v917
  %v932 = vmul.f32 %v911, %v917
  %v933 = vmul.f32 %v916, %v917
  %v934 = vsub.f32 %v582, %v918
  %v935 = vsub.f32 %v584, %v918
  %v936 = vsub.f32 %v743, %v918
  %v937 = vsub.f32 %v745, %v918
  %v938 = vsub.f32 %v588, %v919
  %v939 = vsub.f32 %v590, %v919
  %v940 = vsub.f32 %v749, %v919
  %v941 = vsub.f32 %v751, %v919
  %v942 = vsub.f32 %v594, %v920
  %v943 = vsub.f32 %v596, %v920
  %v944 = vsub.f32 %v755, %v920
  %v945 = vsub.f32 %v757, %v920
  %v946 = vsub.f32 %v600, %v921
  %v947 = vsub.f32 %v602, %v921
  %v948 = vsub.f32 %v761, %v921
  %v949 = vsub.f32 %v763, %v921
  %v950 = vsub.f32 %v606, %v922
  %v951 = vsub.f32 %v608, %v922
  %v952 = vsub.f32 %v767, %v922
  %v953 = vsub.f32 %v769, %v922
  %v954 = vsub.f32 %v612, %v923
  %v955 = vsub.f32 %v614, %v923
  %v956 = vsub.f32 %v773, %v923
  %v957 = vsub.f32 %v775, %v923
  %v958 = vsub.f32 %v618, %v924
  %v959 = vsub.f32 %v620, %v924
  %v960 = vsub.f32 %v779, %v924
  %v961 = vsub.f32 %v781, %v924
  %v962 = vsub.f32 %v624, %v925
  %v963 = vsub.f32 %v626, %v925
  %v964 = vsub.f32 %v785, %v925
  %v965 = vsub.f32 %v787, %v925
  %v966 = vsub.f32 %v630, %v926
  %v967 = vsub.f32 %v632, %v926
  %v968 = vsub.f32 %v791, %v926
  %v969 = vsub.f32 %v793, %v926
  %v970 = vsub.f32 %v636, %v927
  %v971 = vsub.f32 %v638, %v927
  %v972 = vsub.f32 %v797, %v927
  %v973 = vsub.f32 %v799, %v927
  %v974 = vsub.f32 %v642, %v928
  %v975 = vsub.f32 %v644, %v928
  %v976 = vsub.f32 %v803, %v928
  %v977 = vsub.f32 %v805, %v928
  %v978 = vsub.f32 %v648, %v929
  %v979 = vsub.f32 %v650, %v929
  %v980 = vsub.f32 %v809, %v929
  %v981 = vsub.f32 %v811, %v929
  %v982 = vsub.f32 %v654, %v930
  %v983 = vsub.f32 %v656, %v930
  %v984 = vsub.f32 %v815, %v930
  %v985 = vsub.f32 %v817, %v930
  %v986 = vsub.f32 %v660, %v931
  %v987 = vsub.f32 %v662, %v931
  %v988 = vsub.f32 %v821, %v931
  %v989 = vsub.f32 %v823, %v931
  %v990 = vsub.f32 %v666, %v932
  %v991 = vsub.f32 %v668, %v932
  %v992 = vsub.f32 %v827, %v932
  %v993 = vsub.f32 %v829, %v932
  %v994 = vsub.f32 %v672, %v933
  %v995 = vsub.f32 %v674, %v933
  %v996 = vsub.f32 %v833, %v933
  %v997 = vsub.f32 %v835, %v933
  %v998 = vmul.f32 %v934, %v934
  %v999 = vmul.f32 %v935, %v935
  %v1000 = vmul.f32 %v936, %v936
  %v1001 = vmul.f32 %v937, %v937
  %v1002 = vmul.f32 %v938, %v938
  %v1003 = vmul.f32 %v939, %v939
  %v1004 = vmul.f32 %v940, %v940
  %v1005 = vmul.f32 %v941, %v941
  %v1006 = vmul.f32 %v942, %v942
  %v1007 = vmul.f32 %v943, %v943
  %v1008 = vmul.f32 %v944, %v944
  %v1009 = vmul.f32 %v945, %v945
  %v1010 = vmul.f32 %v946, %v946
  %v1011 = vmul.f32 %v947, %v947
  %v1012 = vmul.f32 %v948, %v948
  %v1013 = vmul.f32 %v949, %v949
  %v1014 = vmul.f32 %v950, %v950
  %v1015 = vmul.f32 %v951, %v951
  %v1016 = vmul.f32 %v952, %v952
  %v1017 = vmul.f32 %v953, %v953
  %v1018 = vmul.f32 %v954, %v954
  %v1019 = vmul.f32 %v955, %v955
  %v1020 = vmul.f32 %v956, %v956
  %v1021 = vmul.f32 %v957, %v957
  %v1022 = vmul.f32 %v958, %v958
  %v1023 = vmul.f32 %v959, %v959
  %v1024 = vmul.f32 %v960, %v960
  %v1025 = vmul.f32 %v961, %v961
  %v1026 = vmul.f32 %v962, %v962
  %v1027 = vmul.f32 %v963, %v963
  %v1028 = vmul.f32 %v964, %v964
  %v1029 = vmul.f32 %v965, %v965
  %v1030 = vmul.f32 %v966, %v966
  %v1031 = vmul.f32 %v967, %v967
  %v1032 = vmul.f32 %v968, %v968
  %v1033 = vmul.f32 %v969, %v969
  %v1034 = vmul.f32 %v970, %v970
  %v1035 = vmul.f32 %v971, %v971
  %v1036 = vmul.f32 %v972, %v972
  %v1037 = vmul.f32 %v973, %v973
  %v1038 = vmul.f32 %v974, %v974
  %v1039 = vmul.f32 %v975, %v975
  %v1040 = vmul.f32 %v976, %v976
  %v1041 = vmul.f32 %v977, %v977
  %v1042 = vmul.f32 %v978, %v978
  %v1043 = vmul.f32 %v979, %v979
  %v1044 = vmul.f32 %v980, %v980
  %v1045 = vmul.f32 %v981, %v981
  %v1046 = vmul.f32 %v982, %v982
  %v1047 = vmul.f32 %v983, %v983
  %v1048 = vmul.f32 %v984, %v984
  %v1049 = vmul.f32 %v985, %v985
  %v1050 = vmul.f32 %v986, %v986
  %v1051 = vmul.f32 %v987, %v987
  %v1052 = vmul.f32 %v988, %v988
  %v1053 = vmul.f32 %v989, %v989
  %v1054 = vmul.f32 %v990, %v990
  %v1055 = vmul.f32 %v991, %v991
  %v1056 = vmul.f32 %v992, %v992
  %v1057 = vmul.f32 %v993, %v993
  %v1058 = vmul.f32 %v994, %v994
  %v1059 = vmul.f32 %v995, %v995
  %v1060 = vmul.f32 %v996, %v996
  %v1061 = vmul.f32 %v997, %v997
  %v1062 = vadd.f32 %v998, %v999
  %v1063 = vadd.f32 %v1062, %v1000
  %v1064 = vadd.f32 %v1063, %v1001
  %1065 = vadd.xlane.f32.xlu0 %v1064
  %v1066 = vpop.xlane.xlu0 %1065
  %v1067 = vadd.f32 %v1002, %v1003
  %v1068 = vadd.f32 %v1067, %v1004
  %v1069 = vadd.f32 %v1068, %v1005
  %1070 = vadd.xlane.f32.xlu0 %v1069
  %v1071 = vpop.xlane.xlu0 %1070
  %v1072 = vadd.f32 %v1006, %v1007
  %v1073 = vadd.f32 %v1072, %v1008
  %v1074 = vadd.f32 %v1073, %v1009
  %1075 = vadd.xlane.f32.xlu0 %v1074
  %v1076 = vpop.xlane.xlu0 %1075
  %v1077 = vadd.f32 %v1010, %v1011
  %v1078 = vadd.f32 %v1077, %v1012
  %v1079 = vadd.f32 %v1078, %v1013
  %1080 = vadd.xlane.f32.xlu0 %v1079
  %v1081 = vpop.xlane.xlu0 %1080
  %v1082 = vadd.f32 %v1014, %v1015
  %v1083 = vadd.f32 %v1082, %v1016
  %v1084 = vadd.f32 %v1083, %v1017
  %1085 = vadd.xlane.f32.xlu0 %v1084
  %v1086 = vpop.xlane.xlu0 %1085
  %v1087 = vadd.f32 %v1018, %v1019
  %v1088 = vadd.f32 %v1087, %v1020
  %v1089 = vadd.f32 %v1088, %v1021
  %1090 = vadd.xlane.f32.xlu0 %v1089
  %v1091 = vpop.xlane.xlu0 %1090
  %v1092 = vadd.f32 %v1022, %v1023
  %v1093 = vadd.f32 %v1092, %v1024
  %v1094 = vadd.f32 %v1093, %v1025
  %1095 = vadd.xlane.f32.xlu0 %v1094
  %v1096 = vpop.xlane.xlu0 %1095
  %v1097 = vadd.f32 %v1026, %v1027
  %v1098 = vadd.f32 %v1097, %v1028
  %v1099 = vadd.f32 %v1098, %v1029
  %1100 = vadd.xlane.f32.xlu0 %v1099
  %v1101 = vpop.xlane.xlu0 %1100
  %v1102 = vadd.f32 %v1030, %v1031
  %v1103 = vadd.f32 %v1102, %v1032
  %v1104 = vadd.f32 %v1103, %v1033
  %1105 = vadd.xlane.f32.xlu0 %v1104
  %v1106 = vpop.xlane.xlu0 %1105
  %v1107 = vadd.f32 %v1034, %v1035
  %v1108 = vadd.f32 %v1107, %v1036
  %v1109 = vadd.f32 %v1108, %v1037
  %1110 = vadd.xlane.f32.xlu0 %v1109
  %v1111 = vpop.xlane.xlu0 %1110
  %v1112 = vadd.f32 %v1038, %v1039
  %v1113 = vadd.f32 %v1112, %v1040
  %v1114 = vadd.f32 %v1113, %v1041
  %1115 = vadd.xlane.f32.xlu0 %v1114
  %v1116 = vpop.xlane.xlu0 %1115
  %v1117 = vadd.f32 %v1042, %v1043
  %v1118 = vadd.f32 %v1117, %v1044
  %v1119 = vadd.f32 %v1118, %v1045
  %1120 = vadd.xlane.f32.xlu0 %v1119
  %v1121 = vpop.xlane.xlu0 %1120
  %v1122 = vadd.f32 %v1046, %v1047
  %v1123 = vadd.f32 %v1122, %v1048
  %v1124 = vadd.f32 %v1123, %v1049
  %1125 = vadd.xlane.f32.xlu0 %v1124
  %v1126 = vpop.xlane.xlu0 %1125
  %v1127 = vadd.f32 %v1050, %v1051
  %v1128 = vadd.f32 %v1127, %v1052
  %v1129 = vadd.f32 %v1128, %v1053
  %1130 = vadd.xlane.f32.xlu0 %v1129
  %v1131 = vpop.xlane.xlu0 %1130
  %v1132 = vadd.f32 %v1054, %v1055
  %v1133 = vadd.f32 %v1132, %v1056
  %v1134 = vadd.f32 %v1133, %v1057
  %1135 = vadd.xlane.f32.xlu0 %v1134
  %v1136 = vpop.xlane.xlu0 %1135
  %v1137 = vadd.f32 %v1058, %v1059
  %v1138 = vadd.f32 %v1137, %v1060
  %v1139 = vadd.f32 %v1138, %v1061
  %1140 = vadd.xlane.f32.xlu0 %v1139
  %v1141 = vpop.xlane.xlu0 %1140
  %v1142 = vmul.f32 %v1066, %v917
  %v1143 = vmul.f32 %v1071, %v917
  %v1144 = vmul.f32 %v1076, %v917
  %v1145 = vmul.f32 %v1081, %v917
  %v1146 = vmul.f32 %v1086, %v917
  %v1147 = vmul.f32 %v1091, %v917
  %v1148 = vmul.f32 %v1096, %v917
  %v1149 = vmul.f32 %v1101, %v917
  %v1150 = vmul.f32 %v1106, %v917
  %v1151 = vmul.f32 %v1111, %v917
  %v1152 = vmul.f32 %v1116, %v917
  %v1153 = vmul.f32 %v1121, %v917
  %v1154 = vmul.f32 %v1126, %v917
  %v1155 = vmul.f32 %v1131, %v917
  %v1156 = vmul.f32 %v1136, %v917
  %v1157 = vmul.f32 %v1141, %v917
  %v1158 = vadd.f32 %v1142, 1e-05
  %v1159 = vadd.f32 %v1143, 1e-05
  %v1160 = vadd.f32 %v1144, 1e-05
  %v1161 = vadd.f32 %v1145, 1e-05
  %v1162 = vadd.f32 %v1146, 1e-05
  %v1163 = vadd.f32 %v1147, 1e-05
  %v1164 = vadd.f32 %v1148, 1e-05
  %v1165 = vadd.f32 %v1149, 1e-05
  %v1166 = vadd.f32 %v1150, 1e-05
  %v1167 = vadd.f32 %v1151, 1e-05
  %v1168 = vadd.f32 %v1152, 1e-05
  %v1169 = vadd.f32 %v1153, 1e-05
  %v1170 = vadd.f32 %v1154, 1e-05
  %v1171 = vadd.f32 %v1155, 1e-05
  %v1172 = vadd.f32 %v1156, 1e-05
  %v1173 = vadd.f32 %v1157, 1e-05
  %v1174 = vrsqrt.pop %v1158
  %v1175 = vrsqrt.pop %v1159
  %v1176 = vrsqrt.pop %v1160
  %v1177 = vrsqrt.pop %v1161
  %v1178 = vrsqrt.pop %v1162
  %v1179 = vrsqrt.pop %v1163
  %v1180 = vrsqrt.pop %v1164
  %v1181 = vrsqrt.pop %v1165
  %v1182 = vrsqrt.pop %v1166
  %v1183 = vrsqrt.pop %v1167
  %v1184 = vrsqrt.pop %v1168
  %v1185 = vrsqrt.pop %v1169
  %v1186 = vrsqrt.pop %v1170
  %v1187 = vrsqrt.pop %v1171
  %v1188 = vrsqrt.pop %v1172
  %v1189 = vrsqrt.pop %v1173
  %v1190 = vmul.f32 %v934, %v1174
  %v1191 = vmul.f32 %v935, %v1174
  %v1192 = vmul.f32 %v936, %v1174
  %v1193 = vmul.f32 %v937, %v1174
  %v1194 = vmul.f32 %v938, %v1175
  %v1195 = vmul.f32 %v939, %v1175
  %v1196 = vmul.f32 %v940, %v1175
  %v1197 = vmul.f32 %v941, %v1175
  %v1198 = vmul.f32 %v942, %v1176
  %v1199 = vmul.f32 %v943, %v1176
  %v1200 = vmul.f32 %v944, %v1176
  %v1201 = vmul.f32 %v945, %v1176
  %v1202 = vmul.f32 %v946, %v1177
  %v1203 = vmul.f32 %v947, %v1177
  %v1204 = vmul.f32 %v948, %v1177
  %v1205 = vmul.f32 %v949, %v1177
  %v1206 = vmul.f32 %v950, %v1178
  %v1207 = vmul.f32 %v951, %v1178
  %v1208 = vmul.f32 %v952, %v1178
  %v1209 = vmul.f32 %v953, %v1178
  %v1210 = vmul.f32 %v954, %v1179
  %v1211 = vmul.f32 %v955, %v1179
  %v1212 = vmul.f32 %v956, %v1179
  %v1213 = vmul.f32 %v957, %v1179
  %v1214 = vmul.f32 %v958, %v1180
  %v1215 = vmul.f32 %v959, %v1180
  %v1216 = vmul.f32 %v960, %v1180
  %v1217 = vmul.f32 %v961, %v1180
  %v1218 = vmul.f32 %v962, %v1181
  %v1219 = vmul.f32 %v963, %v1181
  %v1220 = vmul.f32 %v964, %v1181
  %v1221 = vmul.f32 %v965, %v1181
  %v1222 = vmul.f32 %v966, %v1182
  %v1223 = vmul.f32 %v967, %v1182
  %v1224 = vmul.f32 %v968, %v1182
  %v1225 = vmul.f32 %v969, %v1182
  %v1226 = vmul.f32 %v970, %v1183
  %v1227 = vmul.f32 %v971, %v1183
  %v1228 = vmul.f32 %v972, %v1183
  %v1229 = vmul.f32 %v973, %v1183
  %v1230 = vmul.f32 %v974, %v1184
  %v1231 = vmul.f32 %v975, %v1184
  %v1232 = vmul.f32 %v976, %v1184
  %v1233 = vmul.f32 %v977, %v1184
  %v1234 = vmul.f32 %v978, %v1185
  %v1235 = vmul.f32 %v979, %v1185
  %v1236 = vmul.f32 %v980, %v1185
  %v1237 = vmul.f32 %v981, %v1185
  %v1238 = vmul.f32 %v982, %v1186
  %v1239 = vmul.f32 %v983, %v1186
  %v1240 = vmul.f32 %v984, %v1186
  %v1241 = vmul.f32 %v985, %v1186
  %v1242 = vmul.f32 %v986, %v1187
  %v1243 = vmul.f32 %v987, %v1187
  %v1244 = vmul.f32 %v988, %v1187
  %v1245 = vmul.f32 %v989, %v1187
  %v1246 = vmul.f32 %v990, %v1188
  %v1247 = vmul.f32 %v991, %v1188
  %v1248 = vmul.f32 %v992, %v1188
  %v1249 = vmul.f32 %v993, %v1188
  %v1250 = vmul.f32 %v994, %v1189
  %v1251 = vmul.f32 %v995, %v1189
  %v1252 = vmul.f32 %v996, %v1189
  %v1253 = vmul.f32 %v997, %v1189
  %v1254 = vld [vmem:[%s4] sm:$0xff]
  %v1255 = vld [vmem:[%s4 + $0x8] sm:$0xff]
  %v1256 = vld [vmem:[%s4 + $0x10] sm:$0xff]
  %v1257 = vld [vmem:[%s4 + $0x18] sm:$0xff]
  %v1258 = vld [vmem:[%s4 + $0x20] sm:$0xff]
  %v1259 = vld [vmem:[%s4 + $0x28] sm:$0xff]
  %v1260 = vld [vmem:[%s4 + $0x30] sm:$0xff]
  %v1261 = vld [vmem:[%s4 + $0x38] sm:$0xff]
  %v1262 = vld [vmem:[%s4 + $0x40] sm:$0xff]
  %v1263 = vld [vmem:[%s4 + $0x48] sm:$0xff]
  %v1264 = vld [vmem:[%s4 + $0x50] sm:$0xff]
  %v1265 = vld [vmem:[%s4 + $0x58] sm:$0xff]
  %v1266 = vld [vmem:[%s4 + $0x60] sm:$0xff]
  %v1267 = vld [vmem:[%s4 + $0x68] sm:$0xff]
  %v1268 = vld [vmem:[%s4 + $0x70] sm:$0xff]
  %v1269 = vld [vmem:[%s4 + $0x78] sm:$0xff]
  %1271 = vset.pattern.permute.xlu0 0
  %1272 = vperm.xlu0 %1271, %v1254
  %v1273 = vpop.permute.xlu0 %1272
  %1276 = vset.pattern.permute.xlu0 0
  %1277 = vperm.xlu0 %1276, %v1255
  %v1278 = vpop.permute.xlu0 %1277
  %1281 = vset.pattern.permute.xlu0 0
  %1282 = vperm.xlu0 %1281, %v1256
  %v1283 = vpop.permute.xlu0 %1282
  %1286 = vset.pattern.permute.xlu0 0
  %1287 = vperm.xlu0 %1286, %v1257
  %v1288 = vpop.permute.xlu0 %1287
  %1291 = vset.pattern.permute.xlu0 0
  %1292 = vperm.xlu0 %1291, %v1258
  %v1293 = vpop.permute.xlu0 %1292
  %1296 = vset.pattern.permute.xlu0 0
  %1297 = vperm.xlu0 %1296, %v1259
  %v1298 = vpop.permute.xlu0 %1297
  %1301 = vset.pattern.permute.xlu0 0
  %1302 = vperm.xlu0 %1301, %v1260
  %v1303 = vpop.permute.xlu0 %1302
  %1306 = vset.pattern.permute.xlu0 0
  %1307 = vperm.xlu0 %1306, %v1261
  %v1308 = vpop.permute.xlu0 %1307
  %1311 = vset.pattern.permute.xlu0 0
  %1312 = vperm.xlu0 %1311, %v1262
  %v1313 = vpop.permute.xlu0 %1312
  %1316 = vset.pattern.permute.xlu0 0
  %1317 = vperm.xlu0 %1316, %v1263
  %v1318 = vpop.permute.xlu0 %1317
  %1321 = vset.pattern.permute.xlu0 0
  %1322 = vperm.xlu0 %1321, %v1264
  %v1323 = vpop.permute.xlu0 %1322
  %1326 = vset.pattern.permute.xlu0 0
  %1327 = vperm.xlu0 %1326, %v1265
  %v1328 = vpop.permute.xlu0 %1327
  %1331 = vset.pattern.permute.xlu0 0
  %1332 = vperm.xlu0 %1331, %v1266
  %v1333 = vpop.permute.xlu0 %1332
  %1336 = vset.pattern.permute.xlu0 0
  %1337 = vperm.xlu0 %1336, %v1267
  %v1338 = vpop.permute.xlu0 %1337
  %1341 = vset.pattern.permute.xlu0 0
  %1342 = vperm.xlu0 %1341, %v1268
  %v1343 = vpop.permute.xlu0 %1342
  %1346 = vset.pattern.permute.xlu0 0
  %1347 = vperm.xlu0 %1346, %v1269
  %v1348 = vpop.permute.xlu0 %1347
  %v1350 = vmul.f32 %v1190, %v1273
  %v1351 = vmul.f32 %v1191, %v1273
  %v1352 = vmul.f32 %v1192, %v1273
  %v1353 = vmul.f32 %v1193, %v1273
  %v1354 = vmul.f32 %v1194, %v1278
  %v1355 = vmul.f32 %v1195, %v1278
  %v1356 = vmul.f32 %v1196, %v1278
  %v1357 = vmul.f32 %v1197, %v1278
  %v1358 = vmul.f32 %v1198, %v1283
  %v1359 = vmul.f32 %v1199, %v1283
  %v1360 = vmul.f32 %v1200, %v1283
  %v1361 = vmul.f32 %v1201, %v1283
  %v1362 = vmul.f32 %v1202, %v1288
  %v1363 = vmul.f32 %v1203, %v1288
  %v1364 = vmul.f32 %v1204, %v1288
  %v1365 = vmul.f32 %v1205, %v1288
  %v1366 = vmul.f32 %v1206, %v1293
  %v1367 = vmul.f32 %v1207, %v1293
  %v1368 = vmul.f32 %v1208, %v1293
  %v1369 = vmul.f32 %v1209, %v1293
  %v1370 = vmul.f32 %v1210, %v1298
  %v1371 = vmul.f32 %v1211, %v1298
  %v1372 = vmul.f32 %v1212, %v1298
  %v1373 = vmul.f32 %v1213, %v1298
  %v1374 = vmul.f32 %v1214, %v1303
  %v1375 = vmul.f32 %v1215, %v1303
  %v1376 = vmul.f32 %v1216, %v1303
  %v1377 = vmul.f32 %v1217, %v1303
  %v1378 = vmul.f32 %v1218, %v1308
  %v1379 = vmul.f32 %v1219, %v1308
  %v1380 = vmul.f32 %v1220, %v1308
  %v1381 = vmul.f32 %v1221, %v1308
  %v1382 = vmul.f32 %v1222, %v1313
  %v1383 = vmul.f32 %v1223, %v1313
  %v1384 = vmul.f32 %v1224, %v1313
  %v1385 = vmul.f32 %v1225, %v1313
  %v1386 = vmul.f32 %v1226, %v1318
  %v1387 = vmul.f32 %v1227, %v1318
  %v1388 = vmul.f32 %v1228, %v1318
  %v1389 = vmul.f32 %v1229, %v1318
  %v1390 = vmul.f32 %v1230, %v1323
  %v1391 = vmul.f32 %v1231, %v1323
  %v1392 = vmul.f32 %v1232, %v1323
  %v1393 = vmul.f32 %v1233, %v1323
  %v1394 = vmul.f32 %v1234, %v1328
  %v1395 = vmul.f32 %v1235, %v1328
  %v1396 = vmul.f32 %v1236, %v1328
  %v1397 = vmul.f32 %v1237, %v1328
  %v1398 = vmul.f32 %v1238, %v1333
  %v1399 = vmul.f32 %v1239, %v1333
  %v1400 = vmul.f32 %v1240, %v1333
  %v1401 = vmul.f32 %v1241, %v1333
  %v1402 = vmul.f32 %v1242, %v1338
  %v1403 = vmul.f32 %v1243, %v1338
  %v1404 = vmul.f32 %v1244, %v1338
  %v1405 = vmul.f32 %v1245, %v1338
  %v1406 = vmul.f32 %v1246, %v1343
  %v1407 = vmul.f32 %v1247, %v1343
  %v1408 = vmul.f32 %v1248, %v1343
  %v1409 = vmul.f32 %v1249, %v1343
  %v1410 = vmul.f32 %v1250, %v1348
  %v1411 = vmul.f32 %v1251, %v1348
  %v1412 = vmul.f32 %v1252, %v1348
  %v1413 = vmul.f32 %v1253, %v1348
  %v1414 = vld [vmem:[%s5] sm:$0xff]
  %v1415 = vld [vmem:[%s5 + $0x8] sm:$0xff]
  %v1416 = vld [vmem:[%s5 + $0x10] sm:$0xff]
  %v1417 = vld [vmem:[%s5 + $0x18] sm:$0xff]
  %v1418 = vld [vmem:[%s5 + $0x20] sm:$0xff]
  %v1419 = vld [vmem:[%s5 + $0x28] sm:$0xff]
  %v1420 = vld [vmem:[%s5 + $0x30] sm:$0xff]
  %v1421 = vld [vmem:[%s5 + $0x38] sm:$0xff]
  %v1422 = vld [vmem:[%s5 + $0x40] sm:$0xff]
  %v1423 = vld [vmem:[%s5 + $0x48] sm:$0xff]
  %v1424 = vld [vmem:[%s5 + $0x50] sm:$0xff]
  %v1425 = vld [vmem:[%s5 + $0x58] sm:$0xff]
  %v1426 = vld [vmem:[%s5 + $0x60] sm:$0xff]
  %v1427 = vld [vmem:[%s5 + $0x68] sm:$0xff]
  %v1428 = vld [vmem:[%s5 + $0x70] sm:$0xff]
  %v1429 = vld [vmem:[%s5 + $0x78] sm:$0xff]
  %1431 = vset.pattern.permute.xlu0 0
  %1432 = vperm.xlu0 %1431, %v1414
  %v1433 = vpop.permute.xlu0 %1432
  %1436 = vset.pattern.permute.xlu0 0
  %1437 = vperm.xlu0 %1436, %v1415
  %v1438 = vpop.permute.xlu0 %1437
  %1441 = vset.pattern.permute.xlu0 0
  %1442 = vperm.xlu0 %1441, %v1416
  %v1443 = vpop.permute.xlu0 %1442
  %1446 = vset.pattern.permute.xlu0 0
  %1447 = vperm.xlu0 %1446, %v1417
  %v1448 = vpop.permute.xlu0 %1447
  %1451 = vset.pattern.permute.xlu0 0
  %1452 = vperm.xlu0 %1451, %v1418
  %v1453 = vpop.permute.xlu0 %1452
  %1456 = vset.pattern.permute.xlu0 0
  %1457 = vperm.xlu0 %1456, %v1419
  %v1458 = vpop.permute.xlu0 %1457
  %1461 = vset.pattern.permute.xlu0 0
  %1462 = vperm.xlu0 %1461, %v1420
  %v1463 = vpop.permute.xlu0 %1462
  %1466 = vset.pattern.permute.xlu0 0
  %1467 = vperm.xlu0 %1466, %v1421
  %v1468 = vpop.permute.xlu0 %1467
  %1471 = vset.pattern.permute.xlu0 0
  %1472 = vperm.xlu0 %1471, %v1422
  %v1473 = vpop.permute.xlu0 %1472
  %1476 = vset.pattern.permute.xlu0 0
  %1477 = vperm.xlu0 %1476, %v1423
  %v1478 = vpop.permute.xlu0 %1477
  %1481 = vset.pattern.permute.xlu0 0
  %1482 = vperm.xlu0 %1481, %v1424
  %v1483 = vpop.permute.xlu0 %1482
  %1486 = vset.pattern.permute.xlu0 0
  %1487 = vperm.xlu0 %1486, %v1425
  %v1488 = vpop.permute.xlu0 %1487
  %1491 = vset.pattern.permute.xlu0 0
  %1492 = vperm.xlu0 %1491, %v1426
  %v1493 = vpop.permute.xlu0 %1492
  %1496 = vset.pattern.permute.xlu0 0
  %1497 = vperm.xlu0 %1496, %v1427
  %v1498 = vpop.permute.xlu0 %1497
  %1501 = vset.pattern.permute.xlu0 0
  %1502 = vperm.xlu0 %1501, %v1428
  %v1503 = vpop.permute.xlu0 %1502
  %1506 = vset.pattern.permute.xlu0 0
  %1507 = vperm.xlu0 %1506, %v1429
  %v1508 = vpop.permute.xlu0 %1507
  %v1510 = vadd.f32 %v1350, %v1433
  %v1511 = vadd.f32 %v1351, %v1433
  %v1512 = vadd.f32 %v1352, %v1433
  %v1513 = vadd.f32 %v1353, %v1433
  %v1514 = vadd.f32 %v1354, %v1438
  %v1515 = vadd.f32 %v1355, %v1438
  %v1516 = vadd.f32 %v1356, %v1438
  %v1517 = vadd.f32 %v1357, %v1438
  %v1518 = vadd.f32 %v1358, %v1443
  %v1519 = vadd.f32 %v1359, %v1443
  %v1520 = vadd.f32 %v1360, %v1443
  %v1521 = vadd.f32 %v1361, %v1443
  %v1522 = vadd.f32 %v1362, %v1448
  %v1523 = vadd.f32 %v1363, %v1448
  %v1524 = vadd.f32 %v1364, %v1448
  %v1525 = vadd.f32 %v1365, %v1448
  %v1526 = vadd.f32 %v1366, %v1453
  %v1527 = vadd.f32 %v1367, %v1453
  %v1528 = vadd.f32 %v1368, %v1453
  %v1529 = vadd.f32 %v1369, %v1453
  %v1530 = vadd.f32 %v1370, %v1458
  %v1531 = vadd.f32 %v1371, %v1458
  %v1532 = vadd.f32 %v1372, %v1458
  %v1533 = vadd.f32 %v1373, %v1458
  %v1534 = vadd.f32 %v1374, %v1463
  %v1535 = vadd.f32 %v1375, %v1463
  %v1536 = vadd.f32 %v1376, %v1463
  %v1537 = vadd.f32 %v1377, %v1463
  %v1538 = vadd.f32 %v1378, %v1468
  %v1539 = vadd.f32 %v1379, %v1468
  %v1540 = vadd.f32 %v1380, %v1468
  %v1541 = vadd.f32 %v1381, %v1468
  %v1542 = vadd.f32 %v1382, %v1473
  %v1543 = vadd.f32 %v1383, %v1473
  %v1544 = vadd.f32 %v1384, %v1473
  %v1545 = vadd.f32 %v1385, %v1473
  %v1546 = vadd.f32 %v1386, %v1478
  %v1547 = vadd.f32 %v1387, %v1478
  %v1548 = vadd.f32 %v1388, %v1478
  %v1549 = vadd.f32 %v1389, %v1478
  %v1550 = vadd.f32 %v1390, %v1483
  %v1551 = vadd.f32 %v1391, %v1483
  %v1552 = vadd.f32 %v1392, %v1483
  %v1553 = vadd.f32 %v1393, %v1483
  %v1554 = vadd.f32 %v1394, %v1488
  %v1555 = vadd.f32 %v1395, %v1488
  %v1556 = vadd.f32 %v1396, %v1488
  %v1557 = vadd.f32 %v1397, %v1488
  %v1558 = vadd.f32 %v1398, %v1493
  %v1559 = vadd.f32 %v1399, %v1493
  %v1560 = vadd.f32 %v1400, %v1493
  %v1561 = vadd.f32 %v1401, %v1493
  %v1562 = vadd.f32 %v1402, %v1498
  %v1563 = vadd.f32 %v1403, %v1498
  %v1564 = vadd.f32 %v1404, %v1498
  %v1565 = vadd.f32 %v1405, %v1498
  %v1566 = vadd.f32 %v1406, %v1503
  %v1567 = vadd.f32 %v1407, %v1503
  %v1568 = vadd.f32 %v1408, %v1503
  %v1569 = vadd.f32 %v1409, %v1503
  %v1570 = vadd.f32 %v1410, %v1508
  %v1571 = vadd.f32 %v1411, %v1508
  %v1572 = vadd.f32 %v1412, %v1508
  %v1573 = vadd.f32 %v1413, %v1508
  %vm1574 = vcmp.gt.f32.partialorder %v1510, 0.0
  %vm1575 = vcmp.gt.f32.partialorder %v1511, 0.0
  %vm1576 = vcmp.gt.f32.partialorder %v1512, 0.0
  %vm1577 = vcmp.gt.f32.partialorder %v1513, 0.0
  %vm1578 = vcmp.gt.f32.partialorder %v1514, 0.0
  %vm1579 = vcmp.gt.f32.partialorder %v1515, 0.0
  %vm1580 = vcmp.gt.f32.partialorder %v1516, 0.0
  %vm1581 = vcmp.gt.f32.partialorder %v1517, 0.0
  %vm1582 = vcmp.gt.f32.partialorder %v1518, 0.0
  %vm1583 = vcmp.gt.f32.partialorder %v1519, 0.0
  %vm1584 = vcmp.gt.f32.partialorder %v1520, 0.0
  %vm1585 = vcmp.gt.f32.partialorder %v1521, 0.0
  %vm1586 = vcmp.gt.f32.partialorder %v1522, 0.0
  %vm1587 = vcmp.gt.f32.partialorder %v1523, 0.0
  %vm1588 = vcmp.gt.f32.partialorder %v1524, 0.0
  %vm1589 = vcmp.gt.f32.partialorder %v1525, 0.0
  %vm1590 = vcmp.gt.f32.partialorder %v1526, 0.0
  %vm1591 = vcmp.gt.f32.partialorder %v1527, 0.0
  %vm1592 = vcmp.gt.f32.partialorder %v1528, 0.0
  %vm1593 = vcmp.gt.f32.partialorder %v1529, 0.0
  %vm1594 = vcmp.gt.f32.partialorder %v1530, 0.0
  %vm1595 = vcmp.gt.f32.partialorder %v1531, 0.0
  %vm1596 = vcmp.gt.f32.partialorder %v1532, 0.0
  %vm1597 = vcmp.gt.f32.partialorder %v1533, 0.0
  %vm1598 = vcmp.gt.f32.partialorder %v1534, 0.0
  %vm1599 = vcmp.gt.f32.partialorder %v1535, 0.0
  %vm1600 = vcmp.gt.f32.partialorder %v1536, 0.0
  %vm1601 = vcmp.gt.f32.partialorder %v1537, 0.0
  %vm1602 = vcmp.gt.f32.partialorder %v1538, 0.0
  %vm1603 = vcmp.gt.f32.partialorder %v1539, 0.0
  %vm1604 = vcmp.gt.f32.partialorder %v1540, 0.0
  %vm1605 = vcmp.gt.f32.partialorder %v1541, 0.0
  %vm1606 = vcmp.gt.f32.partialorder %v1542, 0.0
  %vm1607 = vcmp.gt.f32.partialorder %v1543, 0.0
  %vm1608 = vcmp.gt.f32.partialorder %v1544, 0.0
  %vm1609 = vcmp.gt.f32.partialorder %v1545, 0.0
  %vm1610 = vcmp.gt.f32.partialorder %v1546, 0.0
  %vm1611 = vcmp.gt.f32.partialorder %v1547, 0.0
  %vm1612 = vcmp.gt.f32.partialorder %v1548, 0.0
  %vm1613 = vcmp.gt.f32.partialorder %v1549, 0.0
  %vm1614 = vcmp.gt.f32.partialorder %v1550, 0.0
  %vm1615 = vcmp.gt.f32.partialorder %v1551, 0.0
  %vm1616 = vcmp.gt.f32.partialorder %v1552, 0.0
  %vm1617 = vcmp.gt.f32.partialorder %v1553, 0.0
  %vm1618 = vcmp.gt.f32.partialorder %v1554, 0.0
  %vm1619 = vcmp.gt.f32.partialorder %v1555, 0.0
  %vm1620 = vcmp.gt.f32.partialorder %v1556, 0.0
  %vm1621 = vcmp.gt.f32.partialorder %v1557, 0.0
  %vm1622 = vcmp.gt.f32.partialorder %v1558, 0.0
  %vm1623 = vcmp.gt.f32.partialorder %v1559, 0.0
  %vm1624 = vcmp.gt.f32.partialorder %v1560, 0.0
  %vm1625 = vcmp.gt.f32.partialorder %v1561, 0.0
  %vm1626 = vcmp.gt.f32.partialorder %v1562, 0.0
  %vm1627 = vcmp.gt.f32.partialorder %v1563, 0.0
  %vm1628 = vcmp.gt.f32.partialorder %v1564, 0.0
  %vm1629 = vcmp.gt.f32.partialorder %v1565, 0.0
  %vm1630 = vcmp.gt.f32.partialorder %v1566, 0.0
  %vm1631 = vcmp.gt.f32.partialorder %v1567, 0.0
  %vm1632 = vcmp.gt.f32.partialorder %v1568, 0.0
  %vm1633 = vcmp.gt.f32.partialorder %v1569, 0.0
  %vm1634 = vcmp.gt.f32.partialorder %v1570, 0.0
  %vm1635 = vcmp.gt.f32.partialorder %v1571, 0.0
  %vm1636 = vcmp.gt.f32.partialorder %v1572, 0.0
  %vm1637 = vcmp.gt.f32.partialorder %v1573, 0.0
  %v1638 = vmul.f32 %v1510, 0.2
  %v1639 = vmul.f32 %v1511, 0.2
  %v1640 = vmul.f32 %v1512, 0.2
  %v1641 = vmul.f32 %v1513, 0.2
  %v1642 = vmul.f32 %v1514, 0.2
  %v1643 = vmul.f32 %v1515, 0.2
  %v1644 = vmul.f32 %v1516, 0.2
  %v1645 = vmul.f32 %v1517, 0.2
  %v1646 = vmul.f32 %v1518, 0.2
  %v1647 = vmul.f32 %v1519, 0.2
  %v1648 = vmul.f32 %v1520, 0.2
  %v1649 = vmul.f32 %v1521, 0.2
  %v1650 = vmul.f32 %v1522, 0.2
  %v1651 = vmul.f32 %v1523, 0.2
  %v1652 = vmul.f32 %v1524, 0.2
  %v1653 = vmul.f32 %v1525, 0.2
  %v1654 = vmul.f32 %v1526, 0.2
  %v1655 = vmul.f32 %v1527, 0.2
  %v1656 = vmul.f32 %v1528, 0.2
  %v1657 = vmul.f32 %v1529, 0.2
  %v1658 = vmul.f32 %v1530, 0.2
  %v1659 = vmul.f32 %v1531, 0.2
  %v1660 = vmul.f32 %v1532, 0.2
  %v1661 = vmul.f32 %v1533, 0.2
  %v1662 = vmul.f32 %v1534, 0.2
  %v1663 = vmul.f32 %v1535, 0.2
  %v1664 = vmul.f32 %v1536, 0.2
  %v1665 = vmul.f32 %v1537, 0.2
  %v1666 = vmul.f32 %v1538, 0.2
  %v1667 = vmul.f32 %v1539, 0.2
  %v1668 = vmul.f32 %v1540, 0.2
  %v1669 = vmul.f32 %v1541, 0.2
  %v1670 = vmul.f32 %v1542, 0.2
  %v1671 = vmul.f32 %v1543, 0.2
  %v1672 = vmul.f32 %v1544, 0.2
  %v1673 = vmul.f32 %v1545, 0.2
  %v1674 = vmul.f32 %v1546, 0.2
  %v1675 = vmul.f32 %v1547, 0.2
  %v1676 = vmul.f32 %v1548, 0.2
  %v1677 = vmul.f32 %v1549, 0.2
  %v1678 = vmul.f32 %v1550, 0.2
  %v1679 = vmul.f32 %v1551, 0.2
  %v1680 = vmul.f32 %v1552, 0.2
  %v1681 = vmul.f32 %v1553, 0.2
  %v1682 = vmul.f32 %v1554, 0.2
  %v1683 = vmul.f32 %v1555, 0.2
  %v1684 = vmul.f32 %v1556, 0.2
  %v1685 = vmul.f32 %v1557, 0.2
  %v1686 = vmul.f32 %v1558, 0.2
  %v1687 = vmul.f32 %v1559, 0.2
  %v1688 = vmul.f32 %v1560, 0.2
  %v1689 = vmul.f32 %v1561, 0.2
  %v1690 = vmul.f32 %v1562, 0.2
  %v1691 = vmul.f32 %v1563, 0.2
  %v1692 = vmul.f32 %v1564, 0.2
  %v1693 = vmul.f32 %v1565, 0.2
  %v1694 = vmul.f32 %v1566, 0.2
  %v1695 = vmul.f32 %v1567, 0.2
  %v1696 = vmul.f32 %v1568, 0.2
  %v1697 = vmul.f32 %v1569, 0.2
  %v1698 = vmul.f32 %v1570, 0.2
  %v1699 = vmul.f32 %v1571, 0.2
  %v1700 = vmul.f32 %v1572, 0.2
  %v1701 = vmul.f32 %v1573, 0.2
  %v1702 = vsel %vm1574, %v1510, %v1638
  %v1703 = vsel %vm1575, %v1511, %v1639
  %v1704 = vsel %vm1576, %v1512, %v1640
  %v1705 = vsel %vm1577, %v1513, %v1641
  %v1706 = vsel %vm1578, %v1514, %v1642
  %v1707 = vsel %vm1579, %v1515, %v1643
  %v1708 = vsel %vm1580, %v1516, %v1644
  %v1709 = vsel %vm1581, %v1517, %v1645
  %v1710 = vsel %vm1582, %v1518, %v1646
  %v1711 = vsel %vm1583, %v1519, %v1647
  %v1712 = vsel %vm1584, %v1520, %v1648
  %v1713 = vsel %vm1585, %v1521, %v1649
  %v1714 = vsel %vm1586, %v1522, %v1650
  %v1715 = vsel %vm1587, %v1523, %v1651
  %v1716 = vsel %vm1588, %v1524, %v1652
  %v1717 = vsel %vm1589, %v1525, %v1653
  %v1718 = vsel %vm1590, %v1526, %v1654
  %v1719 = vsel %vm1591, %v1527, %v1655
  %v1720 = vsel %vm1592, %v1528, %v1656
  %v1721 = vsel %vm1593, %v1529, %v1657
  %v1722 = vsel %vm1594, %v1530, %v1658
  %v1723 = vsel %vm1595, %v1531, %v1659
  %v1724 = vsel %vm1596, %v1532, %v1660
  %v1725 = vsel %vm1597, %v1533, %v1661
  %v1726 = vsel %vm1598, %v1534, %v1662
  %v1727 = vsel %vm1599, %v1535, %v1663
  %v1728 = vsel %vm1600, %v1536, %v1664
  %v1729 = vsel %vm1601, %v1537, %v1665
  %v1730 = vsel %vm1602, %v1538, %v1666
  %v1731 = vsel %vm1603, %v1539, %v1667
  %v1732 = vsel %vm1604, %v1540, %v1668
  %v1733 = vsel %vm1605, %v1541, %v1669
  %v1734 = vsel %vm1606, %v1542, %v1670
  %v1735 = vsel %vm1607, %v1543, %v1671
  %v1736 = vsel %vm1608, %v1544, %v1672
  %v1737 = vsel %vm1609, %v1545, %v1673
  %v1738 = vsel %vm1610, %v1546, %v1674
  %v1739 = vsel %vm1611, %v1547, %v1675
  %v1740 = vsel %vm1612, %v1548, %v1676
  %v1741 = vsel %vm1613, %v1549, %v1677
  %v1742 = vsel %vm1614, %v1550, %v1678
  %v1743 = vsel %vm1615, %v1551, %v1679
  %v1744 = vsel %vm1616, %v1552, %v1680
  %v1745 = vsel %vm1617, %v1553, %v1681
  %v1746 = vsel %vm1618, %v1554, %v1682
  %v1747 = vsel %vm1619, %v1555, %v1683
  %v1748 = vsel %vm1620, %v1556, %v1684
  %v1749 = vsel %vm1621, %v1557, %v1685
  %v1750 = vsel %vm1622, %v1558, %v1686
  %v1751 = vsel %vm1623, %v1559, %v1687
  %v1752 = vsel %vm1624, %v1560, %v1688
  %v1753 = vsel %vm1625, %v1561, %v1689
  %v1754 = vsel %vm1626, %v1562, %v1690
  %v1755 = vsel %vm1627, %v1563, %v1691
  %v1756 = vsel %vm1628, %v1564, %v1692
  %v1757 = vsel %vm1629, %v1565, %v1693
  %v1758 = vsel %vm1630, %v1566, %v1694
  %v1759 = vsel %vm1631, %v1567, %v1695
  %v1760 = vsel %vm1632, %v1568, %v1696
  %v1761 = vsel %vm1633, %v1569, %v1697
  %v1762 = vsel %vm1634, %v1570, %v1698
  %v1763 = vsel %vm1635, %v1571, %v1699
  %v1764 = vsel %vm1636, %v1572, %v1700
  %v1765 = vsel %vm1637, %v1573, %v1701
  %v1766 = vld [vmem:[%s6] sm:$0x1]
  %1767 = vmatprep.subr.mxu0 %v1703
  %1768 = vmatpush1.msra.mxu0 %v1702
  %1769 = vmatprep.subr.mxu0 %v1707
  %1770 = vmatpush1.msra.mxu0 %v1706
  %1771 = vmatprep.subr.mxu0 %v1711
  %1772 = vmatpush1.msra.mxu0 %v1710
  %1773 = vmatprep.subr.mxu0 %v1715
  %1774 = vmatpush1.msra.mxu0 %v1714
  %1775 = vmatprep.subr.mxu0 %v1719
  %1776 = vmatpush1.msra.mxu0 %v1718
  %1777 = vmatprep.subr.mxu0 %v1723
  %1778 = vmatpush1.msra.mxu0 %v1722
  %1779 = vmatprep.subr.mxu0 %v1727
  %1780 = vmatpush1.msra.mxu0 %v1726
  %1781 = vmatprep.subr.mxu0 %v1731
  %1782 = vmatpush1.msra.mxu0 %v1730
  %1783 = vmatprep.subr.mxu0 %v1735
  %1784 = vmatpush1.msra.mxu0 %v1734
  %1785 = vmatprep.subr.mxu0 %v1739
  %1786 = vmatpush1.msra.mxu0 %v1738
  %1787 = vmatprep.subr.mxu0 %v1743
  %1788 = vmatpush1.msra.mxu0 %v1742
  %1789 = vmatprep.subr.mxu0 %v1747
  %1790 = vmatpush1.msra.mxu0 %v1746
  %1791 = vmatprep.subr.mxu0 %v1751
  %1792 = vmatpush1.msra.mxu0 %v1750
  %1793 = vmatprep.subr.mxu0 %v1755
  %1794 = vmatpush1.msra.mxu0 %v1754
  %1795 = vmatprep.subr.mxu0 %v1759
  %1796 = vmatpush1.msra.mxu0 %v1758
  %1797 = vmatprep.subr.mxu0 %v1763
  %1798 = vmatpush1.msra.mxu0 %v1762
  %1799 = vmatprep.subr.mxu0 0.0
  %1800 = vmatpush1.msra.mxu0 0.0
  %1801 = vmatprep.subr.mxu0 0.0
  %1802 = vmatpush1.msra.mxu0 0.0
  %1803 = vmatprep.subr.mxu0 0.0
  %1804 = vmatpush1.msra.mxu0 0.0
  %1805 = vmatprep.subr.mxu0 0.0
  %1806 = vmatpush1.msra.mxu0 0.0
  %1807 = vmatprep.subr.mxu0 0.0
  %1808 = vmatpush1.msra.mxu0 0.0
  %1809 = vmatprep.subr.mxu0 0.0
  %1810 = vmatpush1.msra.mxu0 0.0
  %1811 = vmatprep.subr.mxu0 0.0
  %1812 = vmatpush1.msra.mxu0 0.0
  %1813 = vmatprep.subr.mxu0 0.0
  %1814 = vmatpush1.msra.mxu0 0.0
  %1815 = vmatprep.subr.mxu0 0.0
  %1816 = vmatpush1.msra.mxu0 0.0
  %1817 = vmatprep.subr.mxu0 0.0
  %1818 = vmatpush1.msra.mxu0 0.0
  %1819 = vmatprep.subr.mxu0 0.0
  %1820 = vmatpush1.msra.mxu0 0.0
  %1821 = vmatprep.subr.mxu0 0.0
  %1822 = vmatpush1.msra.mxu0 0.0
  %1823 = vmatprep.subr.mxu0 0.0
  %1824 = vmatpush1.msra.mxu0 0.0
  %1825 = vmatprep.subr.mxu0 0.0
  %1826 = vmatpush1.msra.mxu0 0.0
  %1827 = vmatprep.subr.mxu0 0.0
  %1828 = vmatpush1.msra.mxu0 0.0
  %1829 = vmatprep.subr.mxu0 0.0
  %1830 = vmatpush1.msra.mxu0 0.0
  %1831 = vmatprep.mubr.f32.mxu0 0.0
  %1832 = vmatmul.mubr.f32.gmra.mrb[0].mxu0 %v1766
  %v1833 = vpop.f32.mrb[0].mxu0
  %v1834 = vadd.f32 0.0, %v1833
  %v1835 = vpop.f32.mrb[0].mxu0
  %v1836 = vadd.f32 0.0, %v1835
  %1837 = vdwg.mxu0
  %1838 = vmatprep.subr.mxu0 %v1705
  %1839 = vmatpush1.msra.mxu0 %v1704
  %1840 = vmatprep.subr.mxu0 %v1709
  %1841 = vmatpush1.msra.mxu0 %v1708
  %1842 = vmatprep.subr.mxu0 %v1713
  %1843 = vmatpush1.msra.mxu0 %v1712
  %1844 = vmatprep.subr.mxu0 %v1717
  %1845 = vmatpush1.msra.mxu0 %v1716
  %1846 = vmatprep.subr.mxu0 %v1721
  %1847 = vmatpush1.msra.mxu0 %v1720
  %1848 = vmatprep.subr.mxu0 %v1725
  %1849 = vmatpush1.msra.mxu0 %v1724
  %1850 = vmatprep.subr.mxu0 %v1729
  %1851 = vmatpush1.msra.mxu0 %v1728
  %1852 = vmatprep.subr.mxu0 %v1733
  %1853 = vmatpush1.msra.mxu0 %v1732
  %1854 = vmatprep.subr.mxu0 %v1737
  %1855 = vmatpush1.msra.mxu0 %v1736
  %1856 = vmatprep.subr.mxu0 %v1741
  %1857 = vmatpush1.msra.mxu0 %v1740
  %1858 = vmatprep.subr.mxu0 %v1745
  %1859 = vmatpush1.msra.mxu0 %v1744
  %1860 = vmatprep.subr.mxu0 %v1749
  %1861 = vmatpush1.msra.mxu0 %v1748
  %1862 = vmatprep.subr.mxu0 %v1753
  %1863 = vmatpush1.msra.mxu0 %v1752
  %1864 = vmatprep.subr.mxu0 %v1757
  %1865 = vmatpush1.msra.mxu0 %v1756
  %1866 = vmatprep.subr.mxu0 %v1761
  %1867 = vmatpush1.msra.mxu0 %v1760
  %1868 = vmatprep.subr.mxu0 %v1765
  %1869 = vmatpush1.msra.mxu0 %v1764
  %1870 = vmatprep.subr.mxu0 0.0
  %1871 = vmatpush1.msra.mxu0 0.0
  %1872 = vmatprep.subr.mxu0 0.0
  %1873 = vmatpush1.msra.mxu0 0.0
  %1874 = vmatprep.subr.mxu0 0.0
  %1875 = vmatpush1.msra.mxu0 0.0
  %1876 = vmatprep.subr.mxu0 0.0
  %1877 = vmatpush1.msra.mxu0 0.0
  %1878 = vmatprep.subr.mxu0 0.0
  %1879 = vmatpush1.msra.mxu0 0.0
  %1880 = vmatprep.subr.mxu0 0.0
  %1881 = vmatpush1.msra.mxu0 0.0
  %1882 = vmatprep.subr.mxu0 0.0
  %1883 = vmatpush1.msra.mxu0 0.0
  %1884 = vmatprep.subr.mxu0 0.0
  %1885 = vmatpush1.msra.mxu0 0.0
  %1886 = vmatprep.subr.mxu0 0.0
  %1887 = vmatpush1.msra.mxu0 0.0
  %1888 = vmatprep.subr.mxu0 0.0
  %1889 = vmatpush1.msra.mxu0 0.0
  %1890 = vmatprep.subr.mxu0 0.0
  %1891 = vmatpush1.msra.mxu0 0.0
  %1892 = vmatprep.subr.mxu0 0.0
  %1893 = vmatpush1.msra.mxu0 0.0
  %1894 = vmatprep.subr.mxu0 0.0
  %1895 = vmatpush1.msra.mxu0 0.0
  %1896 = vmatprep.subr.mxu0 0.0
  %1897 = vmatpush1.msra.mxu0 0.0
  %1898 = vmatprep.subr.mxu0 0.0
  %1899 = vmatpush1.msra.mxu0 0.0
  %1900 = vmatprep.subr.mxu0 0.0
  %1901 = vmatpush1.msra.mxu0 0.0
  %1902 = vmatprep.mubr.f32.mxu0 0.0
  %1903 = vmatmul.mubr.f32.gmra.mrb[0].mxu0 %v1766
  %v1904 = vpop.f32.mrb[0].mxu0
  %v1905 = vadd.f32 0.0, %v1904
  %v1906 = vpop.f32.mrb[0].mxu0
  %v1907 = vadd.f32 0.0, %v1906
  %1908 = vdwg.mxu0
  %v1913 = vcombine.low %v1834, %v1836
  %v1914 = vcombine.low %v1905, %v1907
  %v1916 = vunpack.c.l.s4 1966171168
  %v1917 = vunpack.c.0.s8 %v1916
  %v1918 = vlaneseq
  %v1919 = vshrl.u32 %v1918, 7
  %v1920 = vsub.s32 %v1917, %v1919
  %v1921 = vrot.slane %v1913, %v1920
  %v1923 = vunpack.c.l.s4 1966171168
  %v1924 = vunpack.c.0.s8 %v1923
  %v1925 = vlaneseq
  %v1926 = vshrl.u32 %v1925, 7
  %v1927 = vsub.s32 %v1924, %v1926
  %v1928 = vrot.slane %v1914, %v1927
  %v1929 = vcombine.low %v1921, %v1928
  %v1931 = vunpack.c.l.s4 1966171168
  %v1932 = vunpack.c.0.s8 %v1931
  %v1933 = vlaneseq
  %v1934 = vshrl.u32 %v1933, 7
  %v1935 = vsub.s32 %v1932, %v1934
  %v1936 = vrot.slane %v1929, %v1935
  %v1938 = vlaneseq
  %vm1939 = vcmp.ge.s32.totalorder %v1938, 0
  %vm1940 = vcmp.lt.s32.totalorder %v1938, 512
  %vm1941 = vmand %vm1939, %vm1940
  %1942 = vst.msk [vmem:[%s7] sm:$0xf] %vm1941, %v1936
  // Predicated region
  $region30: #{pixel_discriminator.1} parent=0 // pred_check
    _
  $region31: #{pixel_discriminator.1} parent=0 // pred_check_branch
    %1944 = sbr.rel (0) target = $region33
  $region32: #{pixel_discriminator.1} parent=0 // pred_region
    _
  $region33: #{pixel_discriminator.1} parent=0 // pred_fallthru
    _
  // Predicated region
  $region34: #{pixel_discriminator.1} parent=0 // pred_check
    _
  $region35: #{pixel_discriminator.1} parent=0 // pred_check_branch
    %1946 = sbr.rel (0) target = $region37
  $region36: #{pixel_discriminator.1} parent=0 // pred_region
    _
  $region37: #{pixel_discriminator.1} parent=0 // pred_fallthru
    _

</llo_original>
